<compile_context>
chip_gen: v7x
topology: tpu7x:2x2x1
jax: 0.10.0
libtpu: 0.0.40
codegen_flags: <defaults>
</compile_context>

<pallas_src>
import functools

import jax
import jax.numpy as jnp
import numpy as np
from jax.experimental import pallas as pl
from jax.experimental.pallas import tpu as pltpu

# ------------------------------- constants -----------------------------------

E = 128          # Model.embed_dim (image emb width == state emb width)
AE = 128         # Critic.action_embed_dim
H1 = 128         # first MLP hidden width (per net)
H2 = 64          # second MLP hidden width (per net)
K0_PAD = 24      # padded K for the fused layer-0 matmul (>= state_dim + action_dim)
OUT_LANES = 128  # lane-dense output width

SM_ROWS = 32     # small slab rows: rows 0:K0_PAD layer-0 weights, then biases
R_B0, R_B1, R_G1, R_BE1 = 24, 25, 26, 27
R_B2, R_G2, R_BE2, R_B3 = 28, 29, 30, 31

LN_EPS = 1e-5    # nn.LayerNorm default eps
STD_EPS = 1e-5   # softplus(std) + 1e-5 in Actor.forward


# ----------------------------- in-kernel helpers -----------------------------

def _softplus(x):
    # numerically-stable log(1 + exp(x)) == F.softplus
    return jnp.maximum(x, 0.0) + jnp.log1p(jnp.exp(-jnp.abs(x)))


def _segment_layernorm(x, gamma, beta, seg):
    """LayerNorm applied independently to each `seg`-lane segment of x."""
    n = x.shape[-1] // seg
    parts = []
    for i in range(n):
        xi = x[:, i * seg:(i + 1) * seg]
        mu = jnp.mean(xi, axis=-1, keepdims=True)
        var = jnp.mean((xi - mu) ** 2, axis=-1, keepdims=True)
        parts.append((xi - mu) * jax.lax.rsqrt(var + LN_EPS))
    y = parts[0] if n == 1 else jnp.concatenate(parts, axis=-1)
    return y * gamma + beta


# --------------------------------- wrapper ------------------------------------

@functools.partial(jax.jit, static_argnames=("output_dim",))
def model_forward(states, image_embedding, actions, packed, *, output_dim):
    B, S = states.shape
    A = actions.shape[1]
    O = output_dim

    # One lane-dense input slab: [img(0:128) | states | actions | zeros].
    x_in = jnp.zeros((B, 2 * E), jnp.float32)
    x_in = x_in.at[:, 0:E].set(image_embedding.astype(jnp.float32))
    x_in = x_in.at[:, E:E + S].set(states.astype(jnp.float32))
    x_in = x_in.at[:, E + S:E + S + A].set(actions.astype(jnp.float32))

    sm, w1, w2, w3 = packed["sm"], packed["w1"], packed["w2"], packed["w3"]

    def kernel(x_ref, sm_ref, w1_ref, w2_ref, w3_ref, out_ref):
        x = x_ref[...]                                     # (B, 256)
        img = x[:, 0:E]                                    # image embedding
        lhs0 = x[:, E:E + K0_PAD]                          # [states | actions | 0]

        # ---- layer 0: state_embedder + both action_embedders, one matmul ----
        emb0 = (jnp.dot(lhs0, sm_ref[0:K0_PAD, :],
                        preferred_element_type=jnp.float32)
                + sm_ref[R_B0:R_B0 + 1, :])                # (B, 384)
        s_emb = emb0[:, 0:E]                               # Linear only (no ReLU)
        ae = jnp.maximum(emb0[:, E:3 * E], 0.0)            # [critic_ae | target_ae]

        # ---- layer 1: actor | critic | target, lane-concatenated ------------
        x1 = jnp.concatenate([img, s_emb, ae], axis=-1)    # (B, 512)
        h1 = (jnp.dot(x1, w1_ref[...], preferred_element_type=jnp.float32)
              + sm_ref[R_B1:R_B1 + 1, :])                  # (B, 384)
        h1 = _segment_layernorm(jnp.maximum(h1, 0.0),      # Linear->ReLU->LN
                                sm_ref[R_G1:R_G1 + 1, :],
                                sm_ref[R_BE1:R_BE1 + 1, :], H1)

        # ---- layer 2: block-diagonal (128->64 per net) -----------------------
        h2 = (jnp.dot(h1, w2_ref[...], preferred_element_type=jnp.float32)
              + sm_ref[R_B2:R_B2 + 1, 0:3 * H2])           # (B, 192)
        h2 = _segment_layernorm(jnp.maximum(h2, 0.0),
                                sm_ref[R_G2:R_G2 + 1, 0:3 * H2],
                                sm_ref[R_BE2:R_BE2 + 1, 0:3 * H2], H2)

        # ---- heads: mean/std/q/q_target into one lane-dense buffer ----------
        out = (jnp.dot(h2, w3_ref[...], preferred_element_type=jnp.float32)
               + sm_ref[R_B3:R_B3 + 1, 0:OUT_LANES])       # (B, 128)
        lane = jax.lax.broadcasted_iota(jnp.int32, out.shape, 1)
        std_all = _softplus(out) + STD_EPS
        out_ref[...] = jnp.where((lane >= A) & (lane < 2 * A), std_all, out)

    flops = 2 * B * (K0_PAD * 3 * E + (2 * E + 2 * AE) * 3 * H1
                     + (3 * H1) * (3 * H2) + (3 * H2) * OUT_LANES)
    bytes_accessed = (sum(int(a.size) * 4 for a in (x_in, sm, w1, w2, w3))
                      + B * OUT_LANES * 4)
    transcendentals = B * (2 * OUT_LANES + 6)

    vmem = pl.BlockSpec(memory_space=pltpu.MemorySpace.VMEM)
    out = pl.pallas_call(
        kernel,
        out_shape=jax.ShapeDtypeStruct((B, OUT_LANES), jnp.float32),
        in_specs=[vmem] * 5,
        out_specs=vmem,
        compiler_params=pltpu.CompilerParams(vmem_limit_bytes=8 * 1024 * 1024),
        cost_estimate=pl.CostEstimate(flops=flops,
                                      transcendentals=transcendentals,
                                      bytes_accessed=bytes_accessed),
    )(x_in, sm, w1, w2, w3)

    mean = out[:, 0:A]
    std = out[:, A:2 * A]
    q = out[:, 2 * A:2 * A + O]
    q_t = out[:, 2 * A + O:2 * A + 2 * O]
    return mean, std, q, q_t


# ----------------------------- parameter setup --------------------------------

def _linear_init(key, fan_in, fan_out):
    # PyTorch nn.Linear default: U(-1/sqrt(fan_in), 1/sqrt(fan_in))
    kw, kb = jax.random.split(key)
    bound = 1.0 / float(np.sqrt(fan_in))
    w = jax.random.uniform(kw, (fan_in, fan_out), jnp.float32, -bound, bound)
    b = jax.random.uniform(kb, (fan_out,), jnp.float32, -bound, bound)
    return w, b


def make_state_embedder_params(key, state_dim):
    w, b = _linear_init(key, state_dim, E)
    return dict(w=w, b=b)


def make_actor_params(key, action_dim):
    ks = jax.random.split(key, 4)
    w1, b1 = _linear_init(ks[0], 2 * E, H1)
    w2, b2 = _linear_init(ks[1], H1, H2)
    wm, bm = _linear_init(ks[2], H2, action_dim)
    ws, bs = _linear_init(ks[3], H2, action_dim)
    return dict(w1=w1, b1=b1,
                g1=jnp.ones((H1,), jnp.float32), be1=jnp.zeros((H1,), jnp.float32),
                w2=w2, b2=b2,
                g2=jnp.ones((H2,), jnp.float32), be2=jnp.zeros((H2,), jnp.float32),
                wm=wm, bm=bm, ws=ws, bs=bs)


def make_critic_params(key, action_dim, output_dim):
    ks = jax.random.split(key, 4)
    wa, ba = _linear_init(ks[0], action_dim, AE)
    w1, b1 = _linear_init(ks[1], 2 * E + AE, H1)
    w2, b2 = _linear_init(ks[2], H1, H2)
    w3, b3 = _linear_init(ks[3], H2, output_dim)
    return dict(wa=wa, ba=ba, w1=w1, b1=b1,
                g1=jnp.ones((H1,), jnp.float32), be1=jnp.zeros((H1,), jnp.float32),
                w2=w2, b2=b2,
                g2=jnp.ones((H2,), jnp.float32), be2=jnp.zeros((H2,), jnp.float32),
                w3=w3, b3=b3)


def pack_params(se, ac, cr, tc, state_dim, action_dim, output_dim):
    """Assemble the 4 packed f32 slabs consumed by the kernel."""
    A, O = action_dim, output_dim
    assert state_dim + A <= K0_PAD
    assert 2 * A + 2 * O <= OUT_LANES

    # small slab: layer-0 weights + all biases / LN params
    sm = jnp.zeros((SM_ROWS, 3 * E), jnp.float32)
    sm = sm.at[0:state_dim, 0:E].set(se["w"])
    sm = sm.at[state_dim:state_dim + A, E:E + AE].set(cr["wa"])
    sm = sm.at[state_dim:state_dim + A, E + AE:E + 2 * AE].set(tc["wa"])
    sm = sm.at[R_B0, 0:E].set(se["b"])
    sm = sm.at[R_B0, E:E + AE].set(cr["ba"])
    sm = sm.at[R_B0, E + AE:E + 2 * AE].set(tc["ba"])
    sm = sm.at[R_B1, 0:H1].set(ac["b1"])
    sm = sm.at[R_B1, H1:2 * H1].set(cr["b1"])
    sm = sm.at[R_B1, 2 * H1:3 * H1].set(tc["b1"])
    sm = sm.at[R_G1, 0:H1].set(ac["g1"])
    sm = sm.at[R_G1, H1:2 * H1].set(cr["g1"])
    sm = sm.at[R_G1, 2 * H1:3 * H1].set(tc["g1"])
    sm = sm.at[R_BE1, 0:H1].set(ac["be1"])
    sm = sm.at[R_BE1, H1:2 * H1].set(cr["be1"])
    sm = sm.at[R_BE1, 2 * H1:3 * H1].set(tc["be1"])
    sm = sm.at[R_B2, 0:H2].set(ac["b2"])
    sm = sm.at[R_B2, H2:2 * H2].set(cr["b2"])
    sm = sm.at[R_B2, 2 * H2:3 * H2].set(tc["b2"])
    sm = sm.at[R_G2, 0:H2].set(ac["g2"])
    sm = sm.at[R_G2, H2:2 * H2].set(cr["g2"])
    sm = sm.at[R_G2, 2 * H2:3 * H2].set(tc["g2"])
    sm = sm.at[R_BE2, 0:H2].set(ac["be2"])
    sm = sm.at[R_BE2, H2:2 * H2].set(cr["be2"])
    sm = sm.at[R_BE2, 2 * H2:3 * H2].set(tc["be2"])
    sm = sm.at[R_B3, 0:A].set(ac["bm"])
    sm = sm.at[R_B3, A:2 * A].set(ac["bs"])
    sm = sm.at[R_B3, 2 * A:2 * A + O].set(cr["b3"])
    sm = sm.at[R_B3, 2 * A + O:2 * A + 2 * O].set(tc["b3"])

    # layer-1 weight slab, rows = [img | s_emb | critic_ae | target_ae]
    w1 = jnp.zeros((2 * E + 2 * AE, 3 * H1), jnp.float32)
    w1 = w1.at[0:2 * E, 0:H1].set(ac["w1"])
    w1 = w1.at[0:2 * E, H1:2 * H1].set(cr["w1"][0:2 * E])
    w1 = w1.at[2 * E:2 * E + AE, H1:2 * H1].set(cr["w1"][2 * E:])
    w1 = w1.at[0:2 * E, 2 * H1:3 * H1].set(tc["w1"][0:2 * E])
    w1 = w1.at[2 * E + AE:2 * E + 2 * AE, 2 * H1:3 * H1].set(tc["w1"][2 * E:])

    # layer-2 weight slab, block-diagonal
    w2 = jnp.zeros((3 * H1, 3 * H2), jnp.float32)
    w2 = w2.at[0:H1, 0:H2].set(ac["w2"])
    w2 = w2.at[H1:2 * H1, H2:2 * H2].set(cr["w2"])
    w2 = w2.at[2 * H1:3 * H1, 2 * H2:3 * H2].set(tc["w2"])

    # head weight slab -> one lane-dense (B,128) output
    w3 = jnp.zeros((3 * H2, OUT_LANES), jnp.float32)
    w3 = w3.at[0:H2, 0:A].set(ac["wm"])
    w3 = w3.at[0:H2, A:2 * A].set(ac["ws"])
    w3 = w3.at[H2:2 * H2, 2 * A:2 * A + O].set(cr["w3"])
    w3 = w3.at[2 * H2:3 * H2, 2 * A + O:2 * A + 2 * O].set(tc["w3"])

    return dict(sm=sm, w1=w1, w2=w2, w3=w3)


# ------------------------- pure-JAX reference (for checking) ------------------

def reference_forward(states, image_embedding, actions, se, ac, cr, tc):
    def ln(x, g, b):
        mu = jnp.mean(x, -1, keepdims=True)
        var = jnp.mean((x - mu) ** 2, -1, keepdims=True)
        return (x - mu) * jax.lax.rsqrt(var + LN_EPS) * g + b

    s_emb = states @ se["w"] + se["b"]
    emb = jnp.concatenate([image_embedding, s_emb], axis=-1)

    h = ln(jax.nn.relu(emb @ ac["w1"] + ac["b1"]), ac["g1"], ac["be1"])
    h = ln(jax.nn.relu(h @ ac["w2"] + ac["b2"]), ac["g2"], ac["be2"])
    mean = h @ ac["wm"] + ac["bm"]
    std = jax.nn.softplus(h @ ac["ws"] + ac["bs"]) + STD_EPS

    def critic(p):
        ae = jax.nn.relu(actions @ p["wa"] + p["ba"])
        x = jnp.concatenate([emb, ae], axis=-1)
        hh = ln(jax.nn.relu(x @ p["w1"] + p["b1"]), p["g1"], p["be1"])
        hh = ln(jax.nn.relu(hh @ p["w2"] + p["b2"]), p["g2"], p["be2"])
        return hh @ p["w3"] + p["b3"]

    return mean, std, critic(cr), critic(tc)


# ---------------------------------- main ---------------------------------------

if __name__ == "__main__":
    B = 8
    STATE_DIM = 16
    ACTION_DIM = 4
    OUTPUT_DIM = 1

    key = jax.random.PRNGKey(0)
    k_state, k_img, k_act, k_se, k_actor, k_critic, k_target = jax.random.split(key, 7)

    # inputs
    states = jax.random.normal(k_state, (B, STATE_DIM), jnp.float32)
    actions = jax.random.normal(k_act, (B, ACTION_DIM), jnp.float32)
    # TODO(synk): placeholder for resnet18(images) -> fc(128) output.
    image_embedding = jax.random.normal(k_img, (B, E), jnp.float32)

    # per-module parameters (PyTorch-default init), then packed into 4 slabs
    se_params = make_state_embedder_params(k_se, STATE_DIM)
    actor_params = make_actor_params(k_actor, ACTION_DIM)
    critic_params = make_critic_params(k_critic, ACTION_DIM, OUTPUT_DIM)
    target_params = make_critic_params(k_target, ACTION_DIM, OUTPUT_DIM)
    packed = pack_params(se_params, actor_params, critic_params, target_params,
                         STATE_DIM, ACTION_DIM, OUTPUT_DIM)

    # single fused pallas_call: state_embed + actor + critic + target_critic
    mean, std, q, q_target = model_forward(states, image_embedding, actions,
                                           packed, output_dim=OUTPUT_DIM)
    # Temperature.forward: exp(log(t)) == t
    temperature_param = jnp.float32(1.0)
    temperature = jnp.exp(jnp.log(temperature_param))
    jax.block_until_ready((mean, std, q, q_target, temperature))

    # correctness check against a pure-JAX transcription of the PyTorch graph
    mean_r, std_r, q_r, qt_r = reference_forward(states, image_embedding, actions,
                                                 se_params, actor_params,
                                                 critic_params, target_params)
    np.testing.assert_allclose(np.asarray(mean), np.asarray(mean_r), rtol=5e-2, atol=5e-2)
    np.testing.assert_allclose(np.asarray(std), np.asarray(std_r), rtol=5e-2, atol=5e-2)
    np.testing.assert_allclose(np.asarray(q), np.asarray(q_r), rtol=5e-2, atol=5e-2)
    np.testing.assert_allclose(np.asarray(q_target), np.asarray(qt_r), rtol=5e-2, atol=5e-2)

    assert mean.shape == (B, ACTION_DIM) and std.shape == (B, ACTION_DIM)
    assert q.shape == (B, OUTPUT_DIM) and q_target.shape == (B, OUTPUT_DIM)
    assert bool(jnp.all(std > 0.0))
    assert bool(jnp.isfinite(temperature))

    print("KERNEL_OK")
</pallas_src>

<mosaic_0001>
module attributes {stable_mosaic.version = 11 : i64} {
  func.func @kernel(%arg0: memref<8x256xf32, #tpu.memory_space<vmem>>, %arg1: memref<32x384xf32, #tpu.memory_space<vmem>>, %arg2: memref<512x384xf32, #tpu.memory_space<vmem>>, %arg3: memref<384x192xf32, #tpu.memory_space<vmem>>, %arg4: memref<192x128xf32, #tpu.memory_space<vmem>>, %arg5: memref<8x128xf32, #tpu.memory_space<vmem>>) attributes {dimension_semantics = [], scalar_prefetch = 0 : i64, scratch_operands = 0 : i64, tpu.core_type = #tpu.core_type<tc>} {
    %c0 = arith.constant 0 : index
    %c0_0 = arith.constant 0 : index
    %0 = vector.load %arg0[%c0, %c0_0] : memref<8x256xf32, #tpu.memory_space<vmem>>, vector<8x256xf32>
    %1 = vector.extract_strided_slice %0 {offsets = [0, 0], sizes = [8, 128], strides = [1, 1]} : vector<8x256xf32> to vector<8x128xf32>
    %2 = vector.extract_strided_slice %0 {offsets = [0, 128], sizes = [8, 24], strides = [1, 1]} : vector<8x256xf32> to vector<8x24xf32>
    %c0_1 = arith.constant 0 : index
    %c0_2 = arith.constant 0 : index
    %3 = vector.load %arg1[%c0_1, %c0_2] : memref<32x384xf32, #tpu.memory_space<vmem>>, vector<24x384xf32>
    %cst = arith.constant dense<0.000000e+00> : vector<8x384xf32>
    %4 = tpu.matmul %2, %3, %cst {dimension_numbers = #tpu.dot_dimension_numbers<[1], [0], [0], [1], [0, 0, 1, 1], [], []>} : vector<8x24xf32>, vector<24x384xf32>, vector<8x384xf32> -> vector<8x384xf32>
    %c24 = arith.constant 24 : index
    %c0_3 = arith.constant 0 : index
    %5 = vector.load %arg1[%c24, %c0_3] : memref<32x384xf32, #tpu.memory_space<vmem>>, vector<1x384xf32>
    %6 = vector.broadcast %5 : vector<1x384xf32> to vector<8x384xf32>
    %7 = arith.addf %4, %6 : vector<8x384xf32>
    %8 = vector.extract_strided_slice %7 {offsets = [0, 0], sizes = [8, 128], strides = [1, 1]} : vector<8x384xf32> to vector<8x128xf32>
    %9 = vector.extract_strided_slice %7 {offsets = [0, 128], sizes = [8, 256], strides = [1, 1]} : vector<8x384xf32> to vector<8x256xf32>
    %cst_4 = arith.constant 0.000000e+00 : f32
    %10 = vector.broadcast %cst_4 : f32 to vector<8x256xf32>
    %11 = arith.maximumf %9, %10 : vector<8x256xf32>
    %12 = tpu.concatenate %1, %8, %11 in 1 : vector<8x128xf32>, vector<8x128xf32>, vector<8x256xf32> -> vector<8x512xf32>
    %c0_5 = arith.constant 0 : index
    %c0_6 = arith.constant 0 : index
    %13 = vector.load %arg2[%c0_5, %c0_6] : memref<512x384xf32, #tpu.memory_space<vmem>>, vector<512x384xf32>
    %cst_7 = arith.constant dense<0.000000e+00> : vector<8x384xf32>
    %14 = tpu.matmul %12, %13, %cst_7 {dimension_numbers = #tpu.dot_dimension_numbers<[1], [0], [0], [1], [0, 0, 1, 1], [], []>} : vector<8x512xf32>, vector<512x384xf32>, vector<8x384xf32> -> vector<8x384xf32>
    %c25 = arith.constant 25 : index
    %c0_8 = arith.constant 0 : index
    %15 = vector.load %arg1[%c25, %c0_8] : memref<32x384xf32, #tpu.memory_space<vmem>>, vector<1x384xf32>
    %16 = vector.broadcast %15 : vector<1x384xf32> to vector<8x384xf32>
    %17 = arith.addf %14, %16 : vector<8x384xf32>
    %cst_9 = arith.constant 0.000000e+00 : f32
    %18 = vector.broadcast %cst_9 : f32 to vector<8x384xf32>
    %19 = arith.maximumf %17, %18 : vector<8x384xf32>
    %c26 = arith.constant 26 : index
    %c0_10 = arith.constant 0 : index
    %20 = vector.load %arg1[%c26, %c0_10] : memref<32x384xf32, #tpu.memory_space<vmem>>, vector<1x384xf32>
    %c27 = arith.constant 27 : index
    %c0_11 = arith.constant 0 : index
    %21 = vector.load %arg1[%c27, %c0_11] : memref<32x384xf32, #tpu.memory_space<vmem>>, vector<1x384xf32>
    %22 = vector.extract_strided_slice %19 {offsets = [0, 0], sizes = [8, 128], strides = [1, 1]} : vector<8x384xf32> to vector<8x128xf32>
    %cst_12 = arith.constant dense<0.000000e+00> : vector<8xf32>
    %23 = vector.multi_reduction <add>, %22, %cst_12 [1] : vector<8x128xf32> to vector<8xf32>
    %24 = vector.shape_cast %23 : vector<8xf32> to vector<8x1xf32>
    %cst_13 = arith.constant 1.280000e+02 : f32
    %25 = vector.broadcast %cst_13 : f32 to vector<8x1xf32>
    %26 = arith.divf %24, %25 : vector<8x1xf32>
    %27 = vector.broadcast %26 : vector<8x1xf32> to vector<8x128xf32>
    %28 = arith.subf %22, %27 : vector<8x128xf32>
    %29 = arith.mulf %28, %28 : vector<8x128xf32>
    %cst_14 = arith.constant dense<0.000000e+00> : vector<8xf32>
    %30 = vector.multi_reduction <add>, %29, %cst_14 [1] : vector<8x128xf32> to vector<8xf32>
    %31 = vector.shape_cast %30 : vector<8xf32> to vector<8x1xf32>
    %cst_15 = arith.constant 1.280000e+02 : f32
    %32 = vector.broadcast %cst_15 : f32 to vector<8x1xf32>
    %33 = arith.divf %31, %32 : vector<8x1xf32>
    %34 = vector.broadcast %26 : vector<8x1xf32> to vector<8x128xf32>
    %35 = arith.subf %22, %34 : vector<8x128xf32>
    %cst_16 = arith.constant 9.99999974E-6 : f32
    %36 = vector.broadcast %cst_16 : f32 to vector<8x1xf32>
    %37 = arith.addf %33, %36 : vector<8x1xf32>
    %38 = math.rsqrt %37 : vector<8x1xf32>
    %39 = vector.broadcast %38 : vector<8x1xf32> to vector<8x128xf32>
    %40 = arith.mulf %35, %39 : vector<8x128xf32>
    %41 = vector.extract_strided_slice %19 {offsets = [0, 128], sizes = [8, 128], strides = [1, 1]} : vector<8x384xf32> to vector<8x128xf32>
    %cst_17 = arith.constant dense<0.000000e+00> : vector<8xf32>
    %42 = vector.multi_reduction <add>, %41, %cst_17 [1] : vector<8x128xf32> to vector<8xf32>
    %43 = vector.shape_cast %42 : vector<8xf32> to vector<8x1xf32>
    %cst_18 = arith.constant 1.280000e+02 : f32
    %44 = vector.broadcast %cst_18 : f32 to vector<8x1xf32>
    %45 = arith.divf %43, %44 : vector<8x1xf32>
    %46 = vector.broadcast %45 : vector<8x1xf32> to vector<8x128xf32>
    %47 = arith.subf %41, %46 : vector<8x128xf32>
    %48 = arith.mulf %47, %47 : vector<8x128xf32>
    %cst_19 = arith.constant dense<0.000000e+00> : vector<8xf32>
    %49 = vector.multi_reduction <add>, %48, %cst_19 [1] : vector<8x128xf32> to vector<8xf32>
    %50 = vector.shape_cast %49 : vector<8xf32> to vector<8x1xf32>
    %cst_20 = arith.constant 1.280000e+02 : f32
    %51 = vector.broadcast %cst_20 : f32 to vector<8x1xf32>
    %52 = arith.divf %50, %51 : vector<8x1xf32>
    %53 = vector.broadcast %45 : vector<8x1xf32> to vector<8x128xf32>
    %54 = arith.subf %41, %53 : vector<8x128xf32>
    %cst_21 = arith.constant 9.99999974E-6 : f32
    %55 = vector.broadcast %cst_21 : f32 to vector<8x1xf32>
    %56 = arith.addf %52, %55 : vector<8x1xf32>
    %57 = math.rsqrt %56 : vector<8x1xf32>
    %58 = vector.broadcast %57 : vector<8x1xf32> to vector<8x128xf32>
    %59 = arith.mulf %54, %58 : vector<8x128xf32>
    %60 = vector.extract_strided_slice %19 {offsets = [0, 256], sizes = [8, 128], strides = [1, 1]} : vector<8x384xf32> to vector<8x128xf32>
    %cst_22 = arith.constant dense<0.000000e+00> : vector<8xf32>
    %61 = vector.multi_reduction <add>, %60, %cst_22 [1] : vector<8x128xf32> to vector<8xf32>
    %62 = vector.shape_cast %61 : vector<8xf32> to vector<8x1xf32>
    %cst_23 = arith.constant 1.280000e+02 : f32
    %63 = vector.broadcast %cst_23 : f32 to vector<8x1xf32>
    %64 = arith.divf %62, %63 : vector<8x1xf32>
    %65 = vector.broadcast %64 : vector<8x1xf32> to vector<8x128xf32>
    %66 = arith.subf %60, %65 : vector<8x128xf32>
    %67 = arith.mulf %66, %66 : vector<8x128xf32>
    %cst_24 = arith.constant dense<0.000000e+00> : vector<8xf32>
    %68 = vector.multi_reduction <add>, %67, %cst_24 [1] : vector<8x128xf32> to vector<8xf32>
    %69 = vector.shape_cast %68 : vector<8xf32> to vector<8x1xf32>
    %cst_25 = arith.constant 1.280000e+02 : f32
    %70 = vector.broadcast %cst_25 : f32 to vector<8x1xf32>
    %71 = arith.divf %69, %70 : vector<8x1xf32>
    %72 = vector.broadcast %64 : vector<8x1xf32> to vector<8x128xf32>
    %73 = arith.subf %60, %72 : vector<8x128xf32>
    %cst_26 = arith.constant 9.99999974E-6 : f32
    %74 = vector.broadcast %cst_26 : f32 to vector<8x1xf32>
    %75 = arith.addf %71, %74 : vector<8x1xf32>
    %76 = math.rsqrt %75 : vector<8x1xf32>
    %77 = vector.broadcast %76 : vector<8x1xf32> to vector<8x128xf32>
    %78 = arith.mulf %73, %77 : vector<8x128xf32>
    %79 = tpu.concatenate %40, %59, %78 in 1 : vector<8x128xf32>, vector<8x128xf32>, vector<8x128xf32> -> vector<8x384xf32>
    %80 = vector.broadcast %20 : vector<1x384xf32> to vector<8x384xf32>
    %81 = arith.mulf %79, %80 : vector<8x384xf32>
    %82 = vector.broadcast %21 : vector<1x384xf32> to vector<8x384xf32>
    %83 = arith.addf %81, %82 : vector<8x384xf32>
    %c0_27 = arith.constant 0 : index
    %c0_28 = arith.constant 0 : index
    %84 = vector.load %arg3[%c0_27, %c0_28] : memref<384x192xf32, #tpu.memory_space<vmem>>, vector<384x192xf32>
    %cst_29 = arith.constant dense<0.000000e+00> : vector<8x192xf32>
    %85 = tpu.matmul %83, %84, %cst_29 {dimension_numbers = #tpu.dot_dimension_numbers<[1], [0], [0], [1], [0, 0, 1, 1], [], []>} : vector<8x384xf32>, vector<384x192xf32>, vector<8x192xf32> -> vector<8x192xf32>
    %c28 = arith.constant 28 : index
    %c0_30 = arith.constant 0 : index
    %86 = vector.load %arg1[%c28, %c0_30] : memref<32x384xf32, #tpu.memory_space<vmem>>, vector<1x192xf32>
    %87 = vector.broadcast %86 : vector<1x192xf32> to vector<8x192xf32>
    %88 = arith.addf %85, %87 : vector<8x192xf32>
    %cst_31 = arith.constant 0.000000e+00 : f32
    %89 = vector.broadcast %cst_31 : f32 to vector<8x192xf32>
    %90 = arith.maximumf %88, %89 : vector<8x192xf32>
    %c29 = arith.constant 29 : index
    %c0_32 = arith.constant 0 : index
    %91 = vector.load %arg1[%c29, %c0_32] : memref<32x384xf32, #tpu.memory_space<vmem>>, vector<1x192xf32>
    %c30 = arith.constant 30 : index
    %c0_33 = arith.constant 0 : index
    %92 = vector.load %arg1[%c30, %c0_33] : memref<32x384xf32, #tpu.memory_space<vmem>>, vector<1x192xf32>
    %93 = vector.extract_strided_slice %90 {offsets = [0, 0], sizes = [8, 64], strides = [1, 1]} : vector<8x192xf32> to vector<8x64xf32>
    %cst_34 = arith.constant dense<0.000000e+00> : vector<8xf32>
    %94 = vector.multi_reduction <add>, %93, %cst_34 [1] : vector<8x64xf32> to vector<8xf32>
    %95 = vector.shape_cast %94 : vector<8xf32> to vector<8x1xf32>
    %cst_35 = arith.constant 6.400000e+01 : f32
    %96 = vector.broadcast %cst_35 : f32 to vector<8x1xf32>
    %97 = arith.divf %95, %96 : vector<8x1xf32>
    %98 = vector.broadcast %97 : vector<8x1xf32> to vector<8x64xf32>
    %99 = arith.subf %93, %98 : vector<8x64xf32>
    %100 = arith.mulf %99, %99 : vector<8x64xf32>
    %cst_36 = arith.constant dense<0.000000e+00> : vector<8xf32>
    %101 = vector.multi_reduction <add>, %100, %cst_36 [1] : vector<8x64xf32> to vector<8xf32>
    %102 = vector.shape_cast %101 : vector<8xf32> to vector<8x1xf32>
    %cst_37 = arith.constant 6.400000e+01 : f32
    %103 = vector.broadcast %cst_37 : f32 to vector<8x1xf32>
    %104 = arith.divf %102, %103 : vector<8x1xf32>
    %105 = vector.broadcast %97 : vector<8x1xf32> to vector<8x64xf32>
    %106 = arith.subf %93, %105 : vector<8x64xf32>
    %cst_38 = arith.constant 9.99999974E-6 : f32
    %107 = vector.broadcast %cst_38 : f32 to vector<8x1xf32>
    %108 = arith.addf %104, %107 : vector<8x1xf32>
    %109 = math.rsqrt %108 : vector<8x1xf32>
    %110 = vector.broadcast %109 : vector<8x1xf32> to vector<8x64xf32>
    %111 = arith.mulf %106, %110 : vector<8x64xf32>
    %112 = vector.extract_strided_slice %90 {offsets = [0, 64], sizes = [8, 64], strides = [1, 1]} : vector<8x192xf32> to vector<8x64xf32>
    %cst_39 = arith.constant dense<0.000000e+00> : vector<8xf32>
    %113 = vector.multi_reduction <add>, %112, %cst_39 [1] : vector<8x64xf32> to vector<8xf32>
    %114 = vector.shape_cast %113 : vector<8xf32> to vector<8x1xf32>
    %cst_40 = arith.constant 6.400000e+01 : f32
    %115 = vector.broadcast %cst_40 : f32 to vector<8x1xf32>
    %116 = arith.divf %114, %115 : vector<8x1xf32>
    %117 = vector.broadcast %116 : vector<8x1xf32> to vector<8x64xf32>
    %118 = arith.subf %112, %117 : vector<8x64xf32>
    %119 = arith.mulf %118, %118 : vector<8x64xf32>
    %cst_41 = arith.constant dense<0.000000e+00> : vector<8xf32>
    %120 = vector.multi_reduction <add>, %119, %cst_41 [1] : vector<8x64xf32> to vector<8xf32>
    %121 = vector.shape_cast %120 : vector<8xf32> to vector<8x1xf32>
    %cst_42 = arith.constant 6.400000e+01 : f32
    %122 = vector.broadcast %cst_42 : f32 to vector<8x1xf32>
    %123 = arith.divf %121, %122 : vector<8x1xf32>
    %124 = vector.broadcast %116 : vector<8x1xf32> to vector<8x64xf32>
    %125 = arith.subf %112, %124 : vector<8x64xf32>
    %cst_43 = arith.constant 9.99999974E-6 : f32
    %126 = vector.broadcast %cst_43 : f32 to vector<8x1xf32>
    %127 = arith.addf %123, %126 : vector<8x1xf32>
    %128 = math.rsqrt %127 : vector<8x1xf32>
    %129 = vector.broadcast %128 : vector<8x1xf32> to vector<8x64xf32>
    %130 = arith.mulf %125, %129 : vector<8x64xf32>
    %131 = vector.extract_strided_slice %90 {offsets = [0, 128], sizes = [8, 64], strides = [1, 1]} : vector<8x192xf32> to vector<8x64xf32>
    %cst_44 = arith.constant dense<0.000000e+00> : vector<8xf32>
    %132 = vector.multi_reduction <add>, %131, %cst_44 [1] : vector<8x64xf32> to vector<8xf32>
    %133 = vector.shape_cast %132 : vector<8xf32> to vector<8x1xf32>
    %cst_45 = arith.constant 6.400000e+01 : f32
    %134 = vector.broadcast %cst_45 : f32 to vector<8x1xf32>
    %135 = arith.divf %133, %134 : vector<8x1xf32>
    %136 = vector.broadcast %135 : vector<8x1xf32> to vector<8x64xf32>
    %137 = arith.subf %131, %136 : vector<8x64xf32>
    %138 = arith.mulf %137, %137 : vector<8x64xf32>
    %cst_46 = arith.constant dense<0.000000e+00> : vector<8xf32>
    %139 = vector.multi_reduction <add>, %138, %cst_46 [1] : vector<8x64xf32> to vector<8xf32>
    %140 = vector.shape_cast %139 : vector<8xf32> to vector<8x1xf32>
    %cst_47 = arith.constant 6.400000e+01 : f32
    %141 = vector.broadcast %cst_47 : f32 to vector<8x1xf32>
    %142 = arith.divf %140, %141 : vector<8x1xf32>
    %143 = vector.broadcast %135 : vector<8x1xf32> to vector<8x64xf32>
    %144 = arith.subf %131, %143 : vector<8x64xf32>
    %cst_48 = arith.constant 9.99999974E-6 : f32
    %145 = vector.broadcast %cst_48 : f32 to vector<8x1xf32>
    %146 = arith.addf %142, %145 : vector<8x1xf32>
    %147 = math.rsqrt %146 : vector<8x1xf32>
    %148 = vector.broadcast %147 : vector<8x1xf32> to vector<8x64xf32>
    %149 = arith.mulf %144, %148 : vector<8x64xf32>
    %150 = tpu.concatenate %111, %130, %149 in 1 : vector<8x64xf32>, vector<8x64xf32>, vector<8x64xf32> -> vector<8x192xf32>
    %151 = vector.broadcast %91 : vector<1x192xf32> to vector<8x192xf32>
    %152 = arith.mulf %150, %151 : vector<8x192xf32>
    %153 = vector.broadcast %92 : vector<1x192xf32> to vector<8x192xf32>
    %154 = arith.addf %152, %153 : vector<8x192xf32>
    %c0_49 = arith.constant 0 : index
    %c0_50 = arith.constant 0 : index
    %155 = vector.load %arg4[%c0_49, %c0_50] : memref<192x128xf32, #tpu.memory_space<vmem>>, vector<192x128xf32>
    %cst_51 = arith.constant dense<0.000000e+00> : vector<8x128xf32>
    %156 = tpu.matmul %154, %155, %cst_51 {dimension_numbers = #tpu.dot_dimension_numbers<[1], [0], [0], [1], [0, 0, 1, 1], [], []>} : vector<8x192xf32>, vector<192x128xf32>, vector<8x128xf32> -> vector<8x128xf32>
    %c31 = arith.constant 31 : index
    %c0_52 = arith.constant 0 : index
    %157 = vector.load %arg1[%c31, %c0_52] : memref<32x384xf32, #tpu.memory_space<vmem>>, vector<1x128xf32>
    %158 = vector.broadcast %157 : vector<1x128xf32> to vector<8x128xf32>
    %159 = arith.addf %156, %158 : vector<8x128xf32>
    %160 = tpu.iota {dimensions = array<i32: 1>} : vector<8x128xi32>
    %cst_53 = arith.constant 0.000000e+00 : f32
    %161 = vector.broadcast %cst_53 : f32 to vector<8x128xf32>
    %162 = arith.maximumf %159, %161 : vector<8x128xf32>
    %163 = math.absf %159 : vector<8x128xf32>
    %cst_54 = arith.constant 0.000000e+00 : f32
    %164 = vector.broadcast %cst_54 : f32 to vector<8x128xf32>
    %165 = arith.subf %164, %163 : vector<8x128xf32>
    %166 = math.exp %165 : vector<8x128xf32>
    %167 = math.log1p %166 : vector<8x128xf32>
    %168 = arith.addf %162, %167 : vector<8x128xf32>
    %cst_55 = arith.constant 9.99999974E-6 : f32
    %169 = vector.broadcast %cst_55 : f32 to vector<8x128xf32>
    %170 = arith.addf %168, %169 : vector<8x128xf32>
    %c4_i32 = arith.constant 4 : i32
    %171 = vector.broadcast %c4_i32 : i32 to vector<8x128xi32>
    %172 = arith.cmpi sge, %160, %171 : vector<8x128xi32>
    %c8_i32 = arith.constant 8 : i32
    %173 = vector.broadcast %c8_i32 : i32 to vector<8x128xi32>
    %174 = arith.cmpi slt, %160, %173 : vector<8x128xi32>
    %175 = arith.andi %172, %174 : vector<8x128xi1>
    %176 = arith.select %175, %170, %159 : vector<8x128xi1>, vector<8x128xf32>
    %c0_56 = arith.constant 0 : index
    %c0_57 = arith.constant 0 : index
    %177 = vector.load %arg5[%c0_56, %c0_57] : memref<8x128xf32, #tpu.memory_space<vmem>>, vector<8x128xf32>
    tpu.vector_store %arg5[%c0_56, %c0_57], %176 {strides = array<i32>} : memref<8x128xf32, #tpu.memory_space<vmem>>, vector<8x128xf32>,
    return
  }
}

</mosaic_0001>

<llo_original>
// kernel: model_forward.1
$region0: #{model_forward.1}
  #allocation0 [shape = 'u32[]', space=smem, size = 0x4, offset = 0x4, fixed_abs, tag = 'smem constant byte address 0x4 - core index']
  #allocation1 [shape = 'u32[144,128]{1,0:T(1,128)}', space=vmem, size = 0x12000, scoped, tag = 'internal scratch']
  %s0 = inlined_call_operand.vmem [shape: f32[8,256], index: 0, kind: input, shape index: {}]
  %s1 = inlined_call_operand.vmem [shape: f32[32,384], index: 1, kind: input, shape index: {}]
  %s2 = inlined_call_operand.hbm [shape: f32[512,384], index: 2, kind: input, shape index: {}]
  %s3 = inlined_call_operand.vmem [shape: f32[384,192], index: 3, kind: input, shape index: {}]
  %s4 = inlined_call_operand.vmem [shape: f32[192,128], index: 4, kind: input, shape index: {}]
  %s5 = inlined_call_operand.vmem [shape: f32[8,128], index: 5, kind: output, shape index: {}]
  %s6 = sld [smem:[#allocation0]]
  $region34: #{model_forward.1} parent=0
    _
  %s8 = ssub.s32 1, %s6
  %s9 = scalar_select 0, %s8, %s6
  $region1: #{model_forward.1} parent=0
    #allocation2 [shape = 'u8[786432]{0}', space=vmem, size = 0xc0000, scoped, tag = 'input window, operand 2, single buffered']
    #allocation3 [shape = 's32[1]{0}', space=sflag, size = 0x4, scoped, tag = 'scoped memory for model_forward.1']
    %10 = vsyncpa [#allocation3], 0
    // Predicated region
    $region2: #{model_forward.1} parent=1 // pred_check
      _
    $region3: #{model_forward.1} parent=1 // pred_check_branch
      %12 = sbr.rel (0) target = $region5
    $region4: #{model_forward.1} parent=1 // pred_region
      _
    $region5: #{model_forward.1} parent=1 // pred_fallthru
      _
    // Predicated region
    $region6: #{model_forward.1} parent=1 // pred_check
      _
    $region7: #{model_forward.1} parent=1 // pred_check_branch
      %14 = sbr.rel (0) target = $region9
    $region8: #{model_forward.1} parent=1 // pred_region
      _
    $region9: #{model_forward.1} parent=1 // pred_fallthru
      _
    // Predicated region
    $region10: #{model_forward.1} parent=1 // pred_check
      _
    $region11: #{model_forward.1} parent=1 // pred_check_branch
      %16 = sbr.rel (0) target = $region13
    $region12: #{model_forward.1} parent=1 // pred_region
      %s18 = ssub.s32 24576, 24576
      %19 = vsyncadd [#allocation3], %s18
      %s20 = sshll.u32 [#allocation2], 4
      %s21 = int_to_ptr.vmem [resolvable:$true] %s20
      %26 = dma.hbm_to_vmem [thread:$0]  %s2, 24576, %s21, [#allocation3], 384, 384, 24
    $region13: #{model_forward.1} parent=1 // pred_fallthru
      _
    // Predicated region
    $region14: #{model_forward.1} parent=1 // pred_check
      _
    $region15: #{model_forward.1} parent=1 // pred_check_branch
      %28 = sbr.rel (0) target = $region17
    $region16: #{model_forward.1} parent=1 // pred_region
      _
    $region17: #{model_forward.1} parent=1 // pred_fallthru
      _
    // Predicated region
    $region18: #{model_forward.1} parent=1 // pred_check
      _
    $region19: #{model_forward.1} parent=1 // pred_check_branch
      %30 = sbr.rel (0) target = $region21
    $region20: #{model_forward.1} parent=1 // pred_region
      _
    $region21: #{model_forward.1} parent=1 // pred_fallthru
      _
    // Predicated region
    $region22: #{model_forward.1} parent=1 // pred_check
      _
    $region23: #{model_forward.1} parent=1 // pred_check_branch
      %32 = sbr.rel (0) target = $region25
    $region24: #{model_forward.1} parent=1 // pred_region
      %33 = dma.done [#allocation3], 24576
    $region25: #{model_forward.1} parent=1 // pred_fallthru
      _
    %v34 = vld [vmem:[%s0] sm:$0xff]
    %v35 = vld [vmem:[%s0 + $0x8] sm:$0xff]
    %v36 = vld [vmem:[%s1] sm:$0xff]
    %v37 = vld [vmem:[%s1 + $0x8] sm:$0xff]
    %v38 = vld [vmem:[%s1 + $0x10] sm:$0xff]
    %v39 = vld [vmem:[%s1 + $0x18] sm:$0xff]
    %v40 = vld [vmem:[%s1 + $0x20] sm:$0xff]
    %v41 = vld [vmem:[%s1 + $0x28] sm:$0xff]
    %v42 = vld [vmem:[%s1 + $0x30] sm:$0xff]
    %v43 = vld [vmem:[%s1 + $0x38] sm:$0xff]
    %v44 = vld [vmem:[%s1 + $0x40] sm:$0xff]
    %s45 = scalar_lea.vmem %s1, 72
    %v46 = vld [vmem:[%s45] ss:$8 sm:$0x7]
    %v48 = vlaneseq
    %v49 = vshrl.u32 %v48, 7
    %v50 = vsub.s32 0, %v49
    %v51 = vrot.slane %v46, %v50
    %v52 = vlaneseq
    %v53 = vshrl.u32 %v52, 7
    %v54 = vsub.s32 1, %v53
    %v55 = vrot.slane %v46, %v54
    %v56 = vlaneseq
    %v57 = vshrl.u32 %v56, 7
    %v58 = vsub.s32 2, %v57
    %v59 = vrot.slane %v46, %v58
    %vm63 = vcmask 195584
    %v65 = vsel %vm63, %v35, 0
    %67 = vmatprep.subr.mxu0 %v37
    %68 = vmatpush1.msra.mxu0 %v36
    %69 = vmatprep.subr.mxu0 %v40
    %70 = vmatpush1.msra.mxu0 %v39
    %71 = vmatprep.subr.mxu0 %v43
    %72 = vmatpush1.msra.mxu0 %v42
    %73 = vmatprep.subr.mxu0 0.0
    %74 = vmatpush1.msra.mxu0 0.0
    %75 = vmatprep.subr.mxu0 0.0
    %76 = vmatpush1.msra.mxu0 0.0
    %77 = vmatprep.subr.mxu0 0.0
    %78 = vmatpush1.msra.mxu0 0.0
    %79 = vmatprep.subr.mxu0 0.0
    %80 = vmatpush1.msra.mxu0 0.0
    %81 = vmatprep.subr.mxu0 0.0
    %82 = vmatpush1.msra.mxu0 0.0
    %83 = vmatprep.subr.mxu0 0.0
    %84 = vmatpush1.msra.mxu0 0.0
    %85 = vmatprep.subr.mxu0 0.0
    %86 = vmatpush1.msra.mxu0 0.0
    %87 = vmatprep.subr.mxu0 0.0
    %88 = vmatpush1.msra.mxu0 0.0
    %89 = vmatprep.subr.mxu0 0.0
    %90 = vmatpush1.msra.mxu0 0.0
    %91 = vmatprep.subr.mxu0 0.0
    %92 = vmatpush1.msra.mxu0 0.0
    %93 = vmatprep.subr.mxu0 0.0
    %94 = vmatpush1.msra.mxu0 0.0
    %95 = vmatprep.subr.mxu0 0.0
    %96 = vmatpush1.msra.mxu0 0.0
    %97 = vmatprep.subr.mxu0 0.0
    %98 = vmatpush1.msra.mxu0 0.0
    %99 = vmatprep.subr.mxu0 0.0
    %100 = vmatpush1.msra.mxu0 0.0
    %101 = vmatprep.subr.mxu0 0.0
    %102 = vmatpush1.msra.mxu0 0.0
    %103 = vmatprep.subr.mxu0 0.0
    %104 = vmatpush1.msra.mxu0 0.0
    %105 = vmatprep.subr.mxu0 0.0
    %106 = vmatpush1.msra.mxu0 0.0
    %107 = vmatprep.subr.mxu0 0.0
    %108 = vmatpush1.msra.mxu0 0.0
    %109 = vmatprep.subr.mxu0 0.0
    %110 = vmatpush1.msra.mxu0 0.0
    %111 = vmatprep.subr.mxu0 0.0
    %112 = vmatpush1.msra.mxu0 0.0
    %113 = vmatprep.subr.mxu0 0.0
    %114 = vmatpush1.msra.mxu0 0.0
    %115 = vmatprep.subr.mxu0 0.0
    %116 = vmatpush1.msra.mxu0 0.0
    %117 = vmatprep.subr.mxu0 0.0
    %118 = vmatpush1.msra.mxu0 0.0
    %119 = vmatprep.subr.mxu0 0.0
    %120 = vmatpush1.msra.mxu0 0.0
    %121 = vmatprep.subr.mxu0 0.0
    %122 = vmatpush1.msra.mxu0 0.0
    %123 = vmatprep.subr.mxu0 0.0
    %124 = vmatpush1.msra.mxu0 0.0
    %125 = vmatprep.subr.mxu0 0.0
    %126 = vmatpush1.msra.mxu0 0.0
    %127 = vmatprep.subr.mxu0 0.0
    %128 = vmatpush1.msra.mxu0 0.0
    %129 = vmatprep.subr.mxu0 0.0
    %130 = vmatpush1.msra.mxu0 0.0
    %131 = vmatprep.mubr.f32.mxu0 0.0
    %132 = vmatmul.mubr.f32.gmra.mrb[0].mxu0 %v65
    %v133 = vpop.f32.mrb[0].mxu0
    %v134 = vadd.f32 %v51, %v133
    %v135 = vpop.f32.mrb[0].mxu0
    %v136 = vadd.f32 %v55, %v135
    %137 = vdwg.mxu0
    %138 = vmatprep.subr.mxu0 0.0
    %139 = vmatpush1.msra.mxu0 %v38
    %140 = vmatprep.subr.mxu0 0.0
    %141 = vmatpush1.msra.mxu0 %v41
    %142 = vmatprep.subr.mxu0 0.0
    %143 = vmatpush1.msra.mxu0 %v44
    %144 = vmatprep.subr.mxu0 0.0
    %145 = vmatpush1.msra.mxu0 0.0
    %146 = vmatprep.subr.mxu0 0.0
    %147 = vmatpush1.msra.mxu0 0.0
    %148 = vmatprep.subr.mxu0 0.0
    %149 = vmatpush1.msra.mxu0 0.0
    %150 = vmatprep.subr.mxu0 0.0
    %151 = vmatpush1.msra.mxu0 0.0
    %152 = vmatprep.subr.mxu0 0.0
    %153 = vmatpush1.msra.mxu0 0.0
    %154 = vmatprep.subr.mxu0 0.0
    %155 = vmatpush1.msra.mxu0 0.0
    %156 = vmatprep.subr.mxu0 0.0
    %157 = vmatpush1.msra.mxu0 0.0
    %158 = vmatprep.subr.mxu0 0.0
    %159 = vmatpush1.msra.mxu0 0.0
    %160 = vmatprep.subr.mxu0 0.0
    %161 = vmatpush1.msra.mxu0 0.0
    %162 = vmatprep.subr.mxu0 0.0
    %163 = vmatpush1.msra.mxu0 0.0
    %164 = vmatprep.subr.mxu0 0.0
    %165 = vmatpush1.msra.mxu0 0.0
    %166 = vmatprep.subr.mxu0 0.0
    %167 = vmatpush1.msra.mxu0 0.0
    %168 = vmatprep.subr.mxu0 0.0
    %169 = vmatpush1.msra.mxu0 0.0
    %170 = vmatprep.subr.mxu0 0.0
    %171 = vmatpush1.msra.mxu0 0.0
    %172 = vmatprep.subr.mxu0 0.0
    %173 = vmatpush1.msra.mxu0 0.0
    %174 = vmatprep.subr.mxu0 0.0
    %175 = vmatpush1.msra.mxu0 0.0
    %176 = vmatprep.subr.mxu0 0.0
    %177 = vmatpush1.msra.mxu0 0.0
    %178 = vmatprep.subr.mxu0 0.0
    %179 = vmatpush1.msra.mxu0 0.0
    %180 = vmatprep.subr.mxu0 0.0
    %181 = vmatpush1.msra.mxu0 0.0
    %182 = vmatprep.subr.mxu0 0.0
    %183 = vmatpush1.msra.mxu0 0.0
    %184 = vmatprep.subr.mxu0 0.0
    %185 = vmatpush1.msra.mxu0 0.0
    %186 = vmatprep.subr.mxu0 0.0
    %187 = vmatpush1.msra.mxu0 0.0
    %188 = vmatprep.subr.mxu0 0.0
    %189 = vmatpush1.msra.mxu0 0.0
    %190 = vmatprep.subr.mxu0 0.0
    %191 = vmatpush1.msra.mxu0 0.0
    %192 = vmatprep.subr.mxu0 0.0
    %193 = vmatpush1.msra.mxu0 0.0
    %194 = vmatprep.subr.mxu0 0.0
    %195 = vmatpush1.msra.mxu0 0.0
    %196 = vmatprep.subr.mxu0 0.0
    %197 = vmatpush1.msra.mxu0 0.0
    %198 = vmatprep.subr.mxu0 0.0
    %199 = vmatpush1.msra.mxu0 0.0
    %200 = vmatprep.subr.mxu0 0.0
    %201 = vmatpush1.msra.mxu0 0.0
    %202 = vmatprep.mubr.f32.mxu0 0.0
    %203 = vmatmul.mubr.f32.gmra.mrb[0].mxu0 %v65
    %v204 = vpop.f32.mrb[0].mxu0
    %v205 = vadd.f32 %v59, %v204
    %v206 = vpop.f32.mrb[0].mxu0
    %207 = vdwg.mxu0
    %v208 = vmax.f32 %v136, 0.0
    %v209 = vmax.f32 %v205, 0.0
    %v210 = vld [vmem:[#allocation2] sm:$0xff]
    %v211 = vld [vmem:[#allocation2 + $0x8] sm:$0xff]
    %v212 = vld [vmem:[#allocation2 + $0x10] sm:$0xff]
    %v213 = vld [vmem:[#allocation2 + $0x18] sm:$0xff]
    %v214 = vld [vmem:[#allocation2 + $0x20] sm:$0xff]
    %v215 = vld [vmem:[#allocation2 + $0x28] sm:$0xff]
    %v216 = vld [vmem:[#allocation2 + $0x30] sm:$0xff]
    %v217 = vld [vmem:[#allocation2 + $0x38] sm:$0xff]
    %v218 = vld [vmem:[#allocation2 + $0x40] sm:$0xff]
    %v219 = vld [vmem:[#allocation2 + $0x48] sm:$0xff]
    %v220 = vld [vmem:[#allocation2 + $0x50] sm:$0xff]
    %v221 = vld [vmem:[#allocation2 + $0x58] sm:$0xff]
    %v222 = vld [vmem:[#allocation2 + $0x60] sm:$0xff]
    %v223 = vld [vmem:[#allocation2 + $0x68] sm:$0xff]
    %v224 = vld [vmem:[#allocation2 + $0x70] sm:$0xff]
    %v225 = vld [vmem:[#allocation2 + $0x78] sm:$0xff]
    %v226 = vld [vmem:[#allocation2 + $0x80] sm:$0xff]
    %v227 = vld [vmem:[#allocation2 + $0x88] sm:$0xff]
    %v228 = vld [vmem:[#allocation2 + $0x90] sm:$0xff]
    %v229 = vld [vmem:[#allocation2 + $0x98] sm:$0xff]
    %v230 = vld [vmem:[#allocation2 + $0xa0] sm:$0xff]
    %v231 = vld [vmem:[#allocation2 + $0xa8] sm:$0xff]
    %v232 = vld [vmem:[#allocation2 + $0xb0] sm:$0xff]
    %v233 = vld [vmem:[#allocation2 + $0xb8] sm:$0xff]
    %v234 = vld [vmem:[#allocation2 + $0xc0] sm:$0xff]
    %v235 = vld [vmem:[#allocation2 + $0xc8] sm:$0xff]
    %v236 = vld [vmem:[#allocation2 + $0xd0] sm:$0xff]
    %v237 = vld [vmem:[#allocation2 + $0xd8] sm:$0xff]
    %v238 = vld [vmem:[#allocation2 + $0xe0] sm:$0xff]
    %v239 = vld [vmem:[#allocation2 + $0xe8] sm:$0xff]
    %v240 = vld [vmem:[#allocation2 + $0xf0] sm:$0xff]
    %v241 = vld [vmem:[#allocation2 + $0xf8] sm:$0xff]
    %v242 = vld [vmem:[#allocation2 + $0x100] sm:$0xff]
    %v243 = vld [vmem:[#allocation2 + $0x108] sm:$0xff]
    %v244 = vld [vmem:[#allocation2 + $0x110] sm:$0xff]
    %v245 = vld [vmem:[#allocation2 + $0x118] sm:$0xff]
    %v246 = vld [vmem:[#allocation2 + $0x120] sm:$0xff]
    %v247 = vld [vmem:[#allocation2 + $0x128] sm:$0xff]
    %v248 = vld [vmem:[#allocation2 + $0x130] sm:$0xff]
    %v249 = vld [vmem:[#allocation2 + $0x138] sm:$0xff]
    %v250 = vld [vmem:[#allocation2 + $0x140] sm:$0xff]
    %v251 = vld [vmem:[#allocation2 + $0x148] sm:$0xff]
    %v252 = vld [vmem:[#allocation2 + $0x150] sm:$0xff]
    %v253 = vld [vmem:[#allocation2 + $0x158] sm:$0xff]
    %v254 = vld [vmem:[#allocation2 + $0x160] sm:$0xff]
    %v255 = vld [vmem:[#allocation2 + $0x168] sm:$0xff]
    %v256 = vld [vmem:[#allocation2 + $0x170] sm:$0xff]
    %v257 = vld [vmem:[#allocation2 + $0x178] sm:$0xff]
    %v258 = vld [vmem:[#allocation2 + $0x180] sm:$0xff]
    %v259 = vld [vmem:[#allocation2 + $0x188] sm:$0xff]
    %v260 = vld [vmem:[#allocation2 + $0x190] sm:$0xff]
    %v261 = vld [vmem:[#allocation2 + $0x198] sm:$0xff]
    %v262 = vld [vmem:[#allocation2 + $0x1a0] sm:$0xff]
    %v263 = vld [vmem:[#allocation2 + $0x1a8] sm:$0xff]
    %v264 = vld [vmem:[#allocation2 + $0x1b0] sm:$0xff]
    %v265 = vld [vmem:[#allocation2 + $0x1b8] sm:$0xff]
    %v266 = vld [vmem:[#allocation2 + $0x1c0] sm:$0xff]
    %v267 = vld [vmem:[#allocation2 + $0x1c8] sm:$0xff]
    %v268 = vld [vmem:[#allocation2 + $0x1d0] sm:$0xff]
    %v269 = vld [vmem:[#allocation2 + $0x1d8] sm:$0xff]
    %v270 = vld [vmem:[#allocation2 + $0x1e0] sm:$0xff]
    %v271 = vld [vmem:[#allocation2 + $0x1e8] sm:$0xff]
    %v272 = vld [vmem:[#allocation2 + $0x1f0] sm:$0xff]
    %v273 = vld [vmem:[#allocation2 + $0x1f8] sm:$0xff]
    %v274 = vld [vmem:[#allocation2 + $0x200] sm:$0xff]
    %v275 = vld [vmem:[#allocation2 + $0x208] sm:$0xff]
    %v276 = vld [vmem:[#allocation2 + $0x210] sm:$0xff]
    %v277 = vld [vmem:[#allocation2 + $0x218] sm:$0xff]
    %v278 = vld [vmem:[#allocation2 + $0x220] sm:$0xff]
    %v279 = vld [vmem:[#allocation2 + $0x228] sm:$0xff]
    %v280 = vld [vmem:[#allocation2 + $0x230] sm:$0xff]
    %v281 = vld [vmem:[#allocation2 + $0x238] sm:$0xff]
    %v282 = vld [vmem:[#allocation2 + $0x240] sm:$0xff]
    %v283 = vld [vmem:[#allocation2 + $0x248] sm:$0xff]
    %v284 = vld [vmem:[#allocation2 + $0x250] sm:$0xff]
    %v285 = vld [vmem:[#allocation2 + $0x258] sm:$0xff]
    %v286 = vld [vmem:[#allocation2 + $0x260] sm:$0xff]
    %v287 = vld [vmem:[#allocation2 + $0x268] sm:$0xff]
    %v288 = vld [vmem:[#allocation2 + $0x270] sm:$0xff]
    %v289 = vld [vmem:[#allocation2 + $0x278] sm:$0xff]
    %v290 = vld [vmem:[#allocation2 + $0x280] sm:$0xff]
    %v291 = vld [vmem:[#allocation2 + $0x288] sm:$0xff]
    %v292 = vld [vmem:[#allocation2 + $0x290] sm:$0xff]
    %v293 = vld [vmem:[#allocation2 + $0x298] sm:$0xff]
    %v294 = vld [vmem:[#allocation2 + $0x2a0] sm:$0xff]
    %v295 = vld [vmem:[#allocation2 + $0x2a8] sm:$0xff]
    %v296 = vld [vmem:[#allocation2 + $0x2b0] sm:$0xff]
    %v297 = vld [vmem:[#allocation2 + $0x2b8] sm:$0xff]
    %v298 = vld [vmem:[#allocation2 + $0x2c0] sm:$0xff]
    %v299 = vld [vmem:[#allocation2 + $0x2c8] sm:$0xff]
    %v300 = vld [vmem:[#allocation2 + $0x2d0] sm:$0xff]
    %v301 = vld [vmem:[#allocation2 + $0x2d8] sm:$0xff]
    %v302 = vld [vmem:[#allocation2 + $0x2e0] sm:$0xff]
    %v303 = vld [vmem:[#allocation2 + $0x2e8] sm:$0xff]
    %v304 = vld [vmem:[#allocation2 + $0x2f0] sm:$0xff]
    %v305 = vld [vmem:[#allocation2 + $0x2f8] sm:$0xff]
    %v306 = vld [vmem:[#allocation2 + $0x300] sm:$0xff]
    %v307 = vld [vmem:[#allocation2 + $0x308] sm:$0xff]
    %v308 = vld [vmem:[#allocation2 + $0x310] sm:$0xff]
    %v309 = vld [vmem:[#allocation2 + $0x318] sm:$0xff]
    %v310 = vld [vmem:[#allocation2 + $0x320] sm:$0xff]
    %v311 = vld [vmem:[#allocation2 + $0x328] sm:$0xff]
    %v312 = vld [vmem:[#allocation2 + $0x330] sm:$0xff]
    %v313 = vld [vmem:[#allocation2 + $0x338] sm:$0xff]
    %v314 = vld [vmem:[#allocation2 + $0x340] sm:$0xff]
    %v315 = vld [vmem:[#allocation2 + $0x348] sm:$0xff]
    %v316 = vld [vmem:[#allocation2 + $0x350] sm:$0xff]
    %v317 = vld [vmem:[#allocation2 + $0x358] sm:$0xff]
    %v318 = vld [vmem:[#allocation2 + $0x360] sm:$0xff]
    %v319 = vld [vmem:[#allocation2 + $0x368] sm:$0xff]
    %v320 = vld [vmem:[#allocation2 + $0x370] sm:$0xff]
    %v321 = vld [vmem:[#allocation2 + $0x378] sm:$0xff]
    %v322 = vld [vmem:[#allocation2 + $0x380] sm:$0xff]
    %v323 = vld [vmem:[#allocation2 + $0x388] sm:$0xff]
    %v324 = vld [vmem:[#allocation2 + $0x390] sm:$0xff]
    %v325 = vld [vmem:[#allocation2 + $0x398] sm:$0xff]
    %v326 = vld [vmem:[#allocation2 + $0x3a0] sm:$0xff]
    %v327 = vld [vmem:[#allocation2 + $0x3a8] sm:$0xff]
    %v328 = vld [vmem:[#allocation2 + $0x3b0] sm:$0xff]
    %v329 = vld [vmem:[#allocation2 + $0x3b8] sm:$0xff]
    %v330 = vld [vmem:[#allocation2 + $0x3c0] sm:$0xff]
    %v331 = vld [vmem:[#allocation2 + $0x3c8] sm:$0xff]
    %v332 = vld [vmem:[#allocation2 + $0x3d0] sm:$0xff]
    %v333 = vld [vmem:[#allocation2 + $0x3d8] sm:$0xff]
    %v334 = vld [vmem:[#allocation2 + $0x3e0] sm:$0xff]
    %v335 = vld [vmem:[#allocation2 + $0x3e8] sm:$0xff]
    %v336 = vld [vmem:[#allocation2 + $0x3f0] sm:$0xff]
    %v337 = vld [vmem:[#allocation2 + $0x3f8] sm:$0xff]
    %v338 = vld [vmem:[#allocation2 + $0x400] sm:$0xff]
    %v339 = vld [vmem:[#allocation2 + $0x408] sm:$0xff]
    %v340 = vld [vmem:[#allocation2 + $0x410] sm:$0xff]
    %v341 = vld [vmem:[#allocation2 + $0x418] sm:$0xff]
    %v342 = vld [vmem:[#allocation2 + $0x420] sm:$0xff]
    %v343 = vld [vmem:[#allocation2 + $0x428] sm:$0xff]
    %v344 = vld [vmem:[#allocation2 + $0x430] sm:$0xff]
    %v345 = vld [vmem:[#allocation2 + $0x438] sm:$0xff]
    %v346 = vld [vmem:[#allocation2 + $0x440] sm:$0xff]
    %v347 = vld [vmem:[#allocation2 + $0x448] sm:$0xff]
    %v348 = vld [vmem:[#allocation2 + $0x450] sm:$0xff]
    %v349 = vld [vmem:[#allocation2 + $0x458] sm:$0xff]
    %v350 = vld [vmem:[#allocation2 + $0x460] sm:$0xff]
    %v351 = vld [vmem:[#allocation2 + $0x468] sm:$0xff]
    %v352 = vld [vmem:[#allocation2 + $0x470] sm:$0xff]
    %v353 = vld [vmem:[#allocation2 + $0x478] sm:$0xff]
    %v354 = vld [vmem:[#allocation2 + $0x480] sm:$0xff]
    %v355 = vld [vmem:[#allocation2 + $0x488] sm:$0xff]
    %v356 = vld [vmem:[#allocation2 + $0x490] sm:$0xff]
    %v357 = vld [vmem:[#allocation2 + $0x498] sm:$0xff]
    %v358 = vld [vmem:[#allocation2 + $0x4a0] sm:$0xff]
    %v359 = vld [vmem:[#allocation2 + $0x4a8] sm:$0xff]
    %v360 = vld [vmem:[#allocation2 + $0x4b0] sm:$0xff]
    %v361 = vld [vmem:[#allocation2 + $0x4b8] sm:$0xff]
    %v362 = vld [vmem:[#allocation2 + $0x4c0] sm:$0xff]
    %v363 = vld [vmem:[#allocation2 + $0x4c8] sm:$0xff]
    %v364 = vld [vmem:[#allocation2 + $0x4d0] sm:$0xff]
    %v365 = vld [vmem:[#allocation2 + $0x4d8] sm:$0xff]
    %v366 = vld [vmem:[#allocation2 + $0x4e0] sm:$0xff]
    %v367 = vld [vmem:[#allocation2 + $0x4e8] sm:$0xff]
    %v368 = vld [vmem:[#allocation2 + $0x4f0] sm:$0xff]
    %v369 = vld [vmem:[#allocation2 + $0x4f8] sm:$0xff]
    %v370 = vld [vmem:[#allocation2 + $0x500] sm:$0xff]
    %v371 = vld [vmem:[#allocation2 + $0x508] sm:$0xff]
    %v372 = vld [vmem:[#allocation2 + $0x510] sm:$0xff]
    %v373 = vld [vmem:[#allocation2 + $0x518] sm:$0xff]
    %v374 = vld [vmem:[#allocation2 + $0x520] sm:$0xff]
    %v375 = vld [vmem:[#allocation2 + $0x528] sm:$0xff]
    %v376 = vld [vmem:[#allocation2 + $0x530] sm:$0xff]
    %v377 = vld [vmem:[#allocation2 + $0x538] sm:$0xff]
    %v378 = vld [vmem:[#allocation2 + $0x540] sm:$0xff]
    %v379 = vld [vmem:[#allocation2 + $0x548] sm:$0xff]
    %v380 = vld [vmem:[#allocation2 + $0x550] sm:$0xff]
    %v381 = vld [vmem:[#allocation2 + $0x558] sm:$0xff]
    %v382 = vld [vmem:[#allocation2 + $0x560] sm:$0xff]
    %v383 = vld [vmem:[#allocation2 + $0x568] sm:$0xff]
    %v384 = vld [vmem:[#allocation2 + $0x570] sm:$0xff]
    %v385 = vld [vmem:[#allocation2 + $0x578] sm:$0xff]
    %v386 = vld [vmem:[#allocation2 + $0x580] sm:$0xff]
    %v387 = vld [vmem:[#allocation2 + $0x588] sm:$0xff]
    %v388 = vld [vmem:[#allocation2 + $0x590] sm:$0xff]
    %v389 = vld [vmem:[#allocation2 + $0x598] sm:$0xff]
    %v390 = vld [vmem:[#allocation2 + $0x5a0] sm:$0xff]
    %v391 = vld [vmem:[#allocation2 + $0x5a8] sm:$0xff]
    %v392 = vld [vmem:[#allocation2 + $0x5b0] sm:$0xff]
    %v393 = vld [vmem:[#allocation2 + $0x5b8] sm:$0xff]
    %v394 = vld [vmem:[#allocation2 + $0x5c0] sm:$0xff]
    %v395 = vld [vmem:[#allocation2 + $0x5c8] sm:$0xff]
    %v396 = vld [vmem:[#allocation2 + $0x5d0] sm:$0xff]
    %v397 = vld [vmem:[#allocation2 + $0x5d8] sm:$0xff]
    %v398 = vld [vmem:[#allocation2 + $0x5e0] sm:$0xff]
    %v399 = vld [vmem:[#allocation2 + $0x5e8] sm:$0xff]
    %v400 = vld [vmem:[#allocation2 + $0x5f0] sm:$0xff]
    %v401 = vld [vmem:[#allocation2 + $0x5f8] sm:$0xff]
    %s402 = scalar_lea.vmem %s1, 73
    %v403 = vld [vmem:[%s402] ss:$8 sm:$0x7]
    %v405 = vlaneseq
    %v406 = vshrl.u32 %v405, 7
    %v407 = vsub.s32 0, %v406
    %v408 = vrot.slane %v403, %v407
    %v409 = vlaneseq
    %v410 = vshrl.u32 %v409, 7
    %v411 = vsub.s32 1, %v410
    %v412 = vrot.slane %v403, %v411
    %v413 = vlaneseq
    %v414 = vshrl.u32 %v413, 7
    %v415 = vsub.s32 2, %v414
    %v416 = vrot.slane %v403, %v415
    %420 = vmatprep.subr.mxu0 %v211
    %421 = vmatpush1.msra.mxu0 %v210
    %422 = vmatprep.subr.mxu0 %v214
    %423 = vmatpush1.msra.mxu0 %v213
    %424 = vmatprep.subr.mxu0 %v217
    %425 = vmatpush1.msra.mxu0 %v216
    %426 = vmatprep.subr.mxu0 %v220
    %427 = vmatpush1.msra.mxu0 %v219
    %428 = vmatprep.subr.mxu0 %v223
    %429 = vmatpush1.msra.mxu0 %v222
    %430 = vmatprep.subr.mxu0 %v226
    %431 = vmatpush1.msra.mxu0 %v225
    %432 = vmatprep.subr.mxu0 %v229
    %433 = vmatpush1.msra.mxu0 %v228
    %434 = vmatprep.subr.mxu0 %v232
    %435 = vmatpush1.msra.mxu0 %v231
    %436 = vmatprep.subr.mxu0 %v235
    %437 = vmatpush1.msra.mxu0 %v234
    %438 = vmatprep.subr.mxu0 %v238
    %439 = vmatpush1.msra.mxu0 %v237
    %440 = vmatprep.subr.mxu0 %v241
    %441 = vmatpush1.msra.mxu0 %v240
    %442 = vmatprep.subr.mxu0 %v244
    %443 = vmatpush1.msra.mxu0 %v243
    %444 = vmatprep.subr.mxu0 %v247
    %445 = vmatpush1.msra.mxu0 %v246
    %446 = vmatprep.subr.mxu0 %v250
    %447 = vmatpush1.msra.mxu0 %v249
    %448 = vmatprep.subr.mxu0 %v253
    %449 = vmatpush1.msra.mxu0 %v252
    %450 = vmatprep.subr.mxu0 %v256
    %451 = vmatpush1.msra.mxu0 %v255
    %452 = vmatprep.subr.mxu0 %v259
    %453 = vmatpush1.msra.mxu0 %v258
    %454 = vmatprep.subr.mxu0 %v262
    %455 = vmatpush1.msra.mxu0 %v261
    %456 = vmatprep.subr.mxu0 %v265
    %457 = vmatpush1.msra.mxu0 %v264
    %458 = vmatprep.subr.mxu0 %v268
    %459 = vmatpush1.msra.mxu0 %v267
    %460 = vmatprep.subr.mxu0 %v271
    %461 = vmatpush1.msra.mxu0 %v270
    %462 = vmatprep.subr.mxu0 %v274
    %463 = vmatpush1.msra.mxu0 %v273
    %464 = vmatprep.subr.mxu0 %v277
    %465 = vmatpush1.msra.mxu0 %v276
    %466 = vmatprep.subr.mxu0 %v280
    %467 = vmatpush1.msra.mxu0 %v279
    %468 = vmatprep.subr.mxu0 %v283
    %469 = vmatpush1.msra.mxu0 %v282
    %470 = vmatprep.subr.mxu0 %v286
    %471 = vmatpush1.msra.mxu0 %v285
    %472 = vmatprep.subr.mxu0 %v289
    %473 = vmatpush1.msra.mxu0 %v288
    %474 = vmatprep.subr.mxu0 %v292
    %475 = vmatpush1.msra.mxu0 %v291
    %476 = vmatprep.subr.mxu0 %v295
    %477 = vmatpush1.msra.mxu0 %v294
    %478 = vmatprep.subr.mxu0 %v298
    %479 = vmatpush1.msra.mxu0 %v297
    %480 = vmatprep.subr.mxu0 %v301
    %481 = vmatpush1.msra.mxu0 %v300
    %482 = vmatprep.subr.mxu0 %v304
    %483 = vmatpush1.msra.mxu0 %v303
    %484 = vmatprep.mubr.f32.mxu0 %v134
    %485 = vmatmul.mubr.f32.gmra.mrb[0].mxu0 %v34
    %v486 = vpop.f32.mrb[0].mxu0
    %v487 = vadd.f32 %v408, %v486
    %v488 = vpop.f32.mrb[0].mxu0
    %v489 = vadd.f32 %v412, %v488
    %490 = vdwg.mxu0
    %491 = vmatprep.subr.mxu0 %v307
    %492 = vmatpush1.msra.mxu0 %v306
    %493 = vmatprep.subr.mxu0 %v310
    %494 = vmatpush1.msra.mxu0 %v309
    %495 = vmatprep.subr.mxu0 %v313
    %496 = vmatpush1.msra.mxu0 %v312
    %497 = vmatprep.subr.mxu0 %v316
    %498 = vmatpush1.msra.mxu0 %v315
    %499 = vmatprep.subr.mxu0 %v319
    %500 = vmatpush1.msra.mxu0 %v318
    %501 = vmatprep.subr.mxu0 %v322
    %502 = vmatpush1.msra.mxu0 %v321
    %503 = vmatprep.subr.mxu0 %v325
    %504 = vmatpush1.msra.mxu0 %v324
    %505 = vmatprep.subr.mxu0 %v328
    %506 = vmatpush1.msra.mxu0 %v327
    %507 = vmatprep.subr.mxu0 %v331
    %508 = vmatpush1.msra.mxu0 %v330
    %509 = vmatprep.subr.mxu0 %v334
    %510 = vmatpush1.msra.mxu0 %v333
    %511 = vmatprep.subr.mxu0 %v337
    %512 = vmatpush1.msra.mxu0 %v336
    %513 = vmatprep.subr.mxu0 %v340
    %514 = vmatpush1.msra.mxu0 %v339
    %515 = vmatprep.subr.mxu0 %v343
    %516 = vmatpush1.msra.mxu0 %v342
    %517 = vmatprep.subr.mxu0 %v346
    %518 = vmatpush1.msra.mxu0 %v345
    %519 = vmatprep.subr.mxu0 %v349
    %520 = vmatpush1.msra.mxu0 %v348
    %521 = vmatprep.subr.mxu0 %v352
    %522 = vmatpush1.msra.mxu0 %v351
    %523 = vmatprep.subr.mxu0 %v355
    %524 = vmatpush1.msra.mxu0 %v354
    %525 = vmatprep.subr.mxu0 %v358
    %526 = vmatpush1.msra.mxu0 %v357
    %527 = vmatprep.subr.mxu0 %v361
    %528 = vmatpush1.msra.mxu0 %v360
    %529 = vmatprep.subr.mxu0 %v364
    %530 = vmatpush1.msra.mxu0 %v363
    %531 = vmatprep.subr.mxu0 %v367
    %532 = vmatpush1.msra.mxu0 %v366
    %533 = vmatprep.subr.mxu0 %v370
    %534 = vmatpush1.msra.mxu0 %v369
    %535 = vmatprep.subr.mxu0 %v373
    %536 = vmatpush1.msra.mxu0 %v372
    %537 = vmatprep.subr.mxu0 %v376
    %538 = vmatpush1.msra.mxu0 %v375
    %539 = vmatprep.subr.mxu0 %v379
    %540 = vmatpush1.msra.mxu0 %v378
    %541 = vmatprep.subr.mxu0 %v382
    %542 = vmatpush1.msra.mxu0 %v381
    %543 = vmatprep.subr.mxu0 %v385
    %544 = vmatpush1.msra.mxu0 %v384
    %545 = vmatprep.subr.mxu0 %v388
    %546 = vmatpush1.msra.mxu0 %v387
    %547 = vmatprep.subr.mxu0 %v391
    %548 = vmatpush1.msra.mxu0 %v390
    %549 = vmatprep.subr.mxu0 %v394
    %550 = vmatpush1.msra.mxu0 %v393
    %551 = vmatprep.subr.mxu0 %v397
    %552 = vmatpush1.msra.mxu0 %v396
    %553 = vmatprep.subr.mxu0 %v400
    %554 = vmatpush1.msra.mxu0 %v399
    %555 = vmatprep.mubr.f32.mxu0 %v209
    %556 = vmatmul.mubr.f32.gmra.mrb[0].mxu0 %v208
    %v557 = vpop.f32.mrb[0].mxu0
    %v558 = vadd.f32 %v487, %v557
    %v559 = vpop.f32.mrb[0].mxu0
    %v560 = vadd.f32 %v489, %v559
    %561 = vdwg.mxu0
    %562 = vmatprep.subr.mxu0 0.0
    %563 = vmatpush1.msra.mxu0 %v212
    %564 = vmatprep.subr.mxu0 0.0
    %565 = vmatpush1.msra.mxu0 %v215
    %566 = vmatprep.subr.mxu0 0.0
    %567 = vmatpush1.msra.mxu0 %v218
    %568 = vmatprep.subr.mxu0 0.0
    %569 = vmatpush1.msra.mxu0 %v221
    %570 = vmatprep.subr.mxu0 0.0
    %571 = vmatpush1.msra.mxu0 %v224
    %572 = vmatprep.subr.mxu0 0.0
    %573 = vmatpush1.msra.mxu0 %v227
    %574 = vmatprep.subr.mxu0 0.0
    %575 = vmatpush1.msra.mxu0 %v230
    %576 = vmatprep.subr.mxu0 0.0
    %577 = vmatpush1.msra.mxu0 %v233
    %578 = vmatprep.subr.mxu0 0.0
    %579 = vmatpush1.msra.mxu0 %v236
    %580 = vmatprep.subr.mxu0 0.0
    %581 = vmatpush1.msra.mxu0 %v239
    %582 = vmatprep.subr.mxu0 0.0
    %583 = vmatpush1.msra.mxu0 %v242
    %584 = vmatprep.subr.mxu0 0.0
    %585 = vmatpush1.msra.mxu0 %v245
    %586 = vmatprep.subr.mxu0 0.0
    %587 = vmatpush1.msra.mxu0 %v248
    %588 = vmatprep.subr.mxu0 0.0
    %589 = vmatpush1.msra.mxu0 %v251
    %590 = vmatprep.subr.mxu0 0.0
    %591 = vmatpush1.msra.mxu0 %v254
    %592 = vmatprep.subr.mxu0 0.0
    %593 = vmatpush1.msra.mxu0 %v257
    %594 = vmatprep.subr.mxu0 0.0
    %595 = vmatpush1.msra.mxu0 %v260
    %596 = vmatprep.subr.mxu0 0.0
    %597 = vmatpush1.msra.mxu0 %v263
    %598 = vmatprep.subr.mxu0 0.0
    %599 = vmatpush1.msra.mxu0 %v266
    %600 = vmatprep.subr.mxu0 0.0
    %601 = vmatpush1.msra.mxu0 %v269
    %602 = vmatprep.subr.mxu0 0.0
    %603 = vmatpush1.msra.mxu0 %v272
    %604 = vmatprep.subr.mxu0 0.0
    %605 = vmatpush1.msra.mxu0 %v275
    %606 = vmatprep.subr.mxu0 0.0
    %607 = vmatpush1.msra.mxu0 %v278
    %608 = vmatprep.subr.mxu0 0.0
    %609 = vmatpush1.msra.mxu0 %v281
    %610 = vmatprep.subr.mxu0 0.0
    %611 = vmatpush1.msra.mxu0 %v284
    %612 = vmatprep.subr.mxu0 0.0
    %613 = vmatpush1.msra.mxu0 %v287
    %614 = vmatprep.subr.mxu0 0.0
    %615 = vmatpush1.msra.mxu0 %v290
    %616 = vmatprep.subr.mxu0 0.0
    %617 = vmatpush1.msra.mxu0 %v293
    %618 = vmatprep.subr.mxu0 0.0
    %619 = vmatpush1.msra.mxu0 %v296
    %620 = vmatprep.subr.mxu0 0.0
    %621 = vmatpush1.msra.mxu0 %v299
    %622 = vmatprep.subr.mxu0 0.0
    %623 = vmatpush1.msra.mxu0 %v302
    %624 = vmatprep.subr.mxu0 0.0
    %625 = vmatpush1.msra.mxu0 %v305
    %626 = vmatprep.mubr.f32.mxu0 %v134
    %627 = vmatmul.mubr.f32.gmra.mrb[0].mxu0 %v34
    %v628 = vpop.f32.mrb[0].mxu0
    %v629 = vadd.f32 %v416, %v628
    %v630 = vpop.f32.mrb[0].mxu0
    %631 = vdwg.mxu0
    %632 = vmatprep.subr.mxu0 0.0
    %633 = vmatpush1.msra.mxu0 %v308
    %634 = vmatprep.subr.mxu0 0.0
    %635 = vmatpush1.msra.mxu0 %v311
    %636 = vmatprep.subr.mxu0 0.0
    %637 = vmatpush1.msra.mxu0 %v314
    %638 = vmatprep.subr.mxu0 0.0
    %639 = vmatpush1.msra.mxu0 %v317
    %640 = vmatprep.subr.mxu0 0.0
    %641 = vmatpush1.msra.mxu0 %v320
    %642 = vmatprep.subr.mxu0 0.0
    %643 = vmatpush1.msra.mxu0 %v323
    %644 = vmatprep.subr.mxu0 0.0
    %645 = vmatpush1.msra.mxu0 %v326
    %646 = vmatprep.subr.mxu0 0.0
    %647 = vmatpush1.msra.mxu0 %v329
    %648 = vmatprep.subr.mxu0 0.0
    %649 = vmatpush1.msra.mxu0 %v332
    %650 = vmatprep.subr.mxu0 0.0
    %651 = vmatpush1.msra.mxu0 %v335
    %652 = vmatprep.subr.mxu0 0.0
    %653 = vmatpush1.msra.mxu0 %v338
    %654 = vmatprep.subr.mxu0 0.0
    %655 = vmatpush1.msra.mxu0 %v341
    %656 = vmatprep.subr.mxu0 0.0
    %657 = vmatpush1.msra.mxu0 %v344
    %658 = vmatprep.subr.mxu0 0.0
    %659 = vmatpush1.msra.mxu0 %v347
    %660 = vmatprep.subr.mxu0 0.0
    %661 = vmatpush1.msra.mxu0 %v350
    %662 = vmatprep.subr.mxu0 0.0
    %663 = vmatpush1.msra.mxu0 %v353
    %664 = vmatprep.subr.mxu0 0.0
    %665 = vmatpush1.msra.mxu0 %v356
    %666 = vmatprep.subr.mxu0 0.0
    %667 = vmatpush1.msra.mxu0 %v359
    %668 = vmatprep.subr.mxu0 0.0
    %669 = vmatpush1.msra.mxu0 %v362
    %670 = vmatprep.subr.mxu0 0.0
    %671 = vmatpush1.msra.mxu0 %v365
    %672 = vmatprep.subr.mxu0 0.0
    %673 = vmatpush1.msra.mxu0 %v368
    %674 = vmatprep.subr.mxu0 0.0
    %675 = vmatpush1.msra.mxu0 %v371
    %676 = vmatprep.subr.mxu0 0.0
    %677 = vmatpush1.msra.mxu0 %v374
    %678 = vmatprep.subr.mxu0 0.0
    %679 = vmatpush1.msra.mxu0 %v377
    %680 = vmatprep.subr.mxu0 0.0
    %681 = vmatpush1.msra.mxu0 %v380
    %682 = vmatprep.subr.mxu0 0.0
    %683 = vmatpush1.msra.mxu0 %v383
    %684 = vmatprep.subr.mxu0 0.0
    %685 = vmatpush1.msra.mxu0 %v386
    %686 = vmatprep.subr.mxu0 0.0
    %687 = vmatpush1.msra.mxu0 %v389
    %688 = vmatprep.subr.mxu0 0.0
    %689 = vmatpush1.msra.mxu0 %v392
    %690 = vmatprep.subr.mxu0 0.0
    %691 = vmatpush1.msra.mxu0 %v395
    %692 = vmatprep.subr.mxu0 0.0
    %693 = vmatpush1.msra.mxu0 %v398
    %694 = vmatprep.subr.mxu0 0.0
    %695 = vmatpush1.msra.mxu0 %v401
    %696 = vmatprep.mubr.f32.mxu0 %v209
    %697 = vmatmul.mubr.f32.gmra.mrb[0].mxu0 %v208
    %v698 = vpop.f32.mrb[0].mxu0
    %v699 = vadd.f32 %v629, %v698
    %v700 = vpop.f32.mrb[0].mxu0
    %701 = vdwg.mxu0
    %v702 = vmax.f32 %v558, 0.0
    %v703 = vmax.f32 %v560, 0.0
    %v704 = vmax.f32 %v699, 0.0
    %s705 = scalar_lea.vmem %s1, 74
    %v706 = vld [vmem:[%s705] ss:$8 sm:$0x7]
    %s707 = scalar_lea.vmem %s1, 75
    %v708 = vld [vmem:[%s707] ss:$8 sm:$0x7]
    %709 = vadd.xlane.f32.xlu0 %v702
    %v710 = vpop.xlane.xlu0 %709
    %v711 = vrcp.pop 128.0
    %v712 = vmul.f32 %v710, %v711
    %v713 = vsub.f32 %v702, %v712
    %v714 = vmul.f32 %v713, %v713
    %715 = vadd.xlane.f32.xlu0 %v714
    %v716 = vpop.xlane.xlu0 %715
    %v717 = vmul.f32 %v716, %v711
    %v718 = vadd.f32 %v717, 1e-05
    %v719 = vrsqrt.pop %v718
    %v720 = vmul.f32 %v713, %v719
    %721 = vadd.xlane.f32.xlu0 %v703
    %v722 = vpop.xlane.xlu0 %721
    %v723 = vmul.f32 %v722, %v711
    %v724 = vsub.f32 %v703, %v723
    %v725 = vmul.f32 %v724, %v724
    %726 = vadd.xlane.f32.xlu0 %v725
    %v727 = vpop.xlane.xlu0 %726
    %v728 = vmul.f32 %v727, %v711
    %v729 = vadd.f32 %v728, 1e-05
    %v730 = vrsqrt.pop %v729
    %v731 = vmul.f32 %v724, %v730
    %732 = vadd.xlane.f32.xlu0 %v704
    %v733 = vpop.xlane.xlu0 %732
    %v734 = vmul.f32 %v733, %v711
    %v735 = vsub.f32 %v704, %v734
    %v736 = vmul.f32 %v735, %v735
    %737 = vadd.xlane.f32.xlu0 %v736
    %v738 = vpop.xlane.xlu0 %737
    %v739 = vmul.f32 %v738, %v711
    %v740 = vadd.f32 %v739, 1e-05
    %v741 = vrsqrt.pop %v740
    %v742 = vmul.f32 %v735, %v741
    %v744 = vlaneseq
    %v745 = vshrl.u32 %v744, 7
    %v746 = vsub.s32 0, %v745
    %v747 = vrot.slane %v706, %v746
    %v748 = vlaneseq
    %v749 = vshrl.u32 %v748, 7
    %v750 = vsub.s32 1, %v749
    %v751 = vrot.slane %v706, %v750
    %v752 = vlaneseq
    %v753 = vshrl.u32 %v752, 7
    %v754 = vsub.s32 2, %v753
    %v755 = vrot.slane %v706, %v754
    %v759 = vmul.f32 %v720, %v747
    %v760 = vmul.f32 %v731, %v751
    %v761 = vmul.f32 %v742, %v755
    %v763 = vlaneseq
    %v764 = vshrl.u32 %v763, 7
    %v765 = vsub.s32 0, %v764
    %v766 = vrot.slane %v708, %v765
    %v767 = vlaneseq
    %v768 = vshrl.u32 %v767, 7
    %v769 = vsub.s32 1, %v768
    %v770 = vrot.slane %v708, %v769
    %v771 = vlaneseq
    %v772 = vshrl.u32 %v771, 7
    %v773 = vsub.s32 2, %v772
    %v774 = vrot.slane %v708, %v773
    %v778 = vadd.f32 %v759, %v766
    %v779 = vadd.f32 %v760, %v770
    %v780 = vadd.f32 %v761, %v774
    %v781 = vld [vmem:[%s3] sm:$0xff]
    %v782 = vld [vmem:[%s3 + $0x8] sm:$0xff]
    %v783 = vld [vmem:[%s3 + $0x10] sm:$0xff]
    %v784 = vld [vmem:[%s3 + $0x18] sm:$0xff]
    %v785 = vld [vmem:[%s3 + $0x20] sm:$0xff]
    %v786 = vld [vmem:[%s3 + $0x28] sm:$0xff]
    %v787 = vld [vmem:[%s3 + $0x30] sm:$0xff]
    %v788 = vld [vmem:[%s3 + $0x38] sm:$0xff]
    %v789 = vld [vmem:[%s3 + $0x40] sm:$0xff]
    %v790 = vld [vmem:[%s3 + $0x48] sm:$0xff]
    %v791 = vld [vmem:[%s3 + $0x50] sm:$0xff]
    %v792 = vld [vmem:[%s3 + $0x58] sm:$0xff]
    %v793 = vld [vmem:[%s3 + $0x60] sm:$0xff]
    %v794 = vld [vmem:[%s3 + $0x68] sm:$0xff]
    %v795 = vld [vmem:[%s3 + $0x70] sm:$0xff]
    %v796 = vld [vmem:[%s3 + $0x78] sm:$0xff]
    %v797 = vld [vmem:[%s3 + $0x80] sm:$0xff]
    %v798 = vld [vmem:[%s3 + $0x88] sm:$0xff]
    %v799 = vld [vmem:[%s3 + $0x90] sm:$0xff]
    %v800 = vld [vmem:[%s3 + $0x98] sm:$0xff]
    %v801 = vld [vmem:[%s3 + $0xa0] sm:$0xff]
    %v802 = vld [vmem:[%s3 + $0xa8] sm:$0xff]
    %v803 = vld [vmem:[%s3 + $0xb0] sm:$0xff]
    %v804 = vld [vmem:[%s3 + $0xb8] sm:$0xff]
    %v805 = vld [vmem:[%s3 + $0xc0] sm:$0xff]
    %v806 = vld [vmem:[%s3 + $0xc8] sm:$0xff]
    %v807 = vld [vmem:[%s3 + $0xd0] sm:$0xff]
    %v808 = vld [vmem:[%s3 + $0xd8] sm:$0xff]
    %v809 = vld [vmem:[%s3 + $0xe0] sm:$0xff]
    %v810 = vld [vmem:[%s3 + $0xe8] sm:$0xff]
    %v811 = vld [vmem:[%s3 + $0xf0] sm:$0xff]
    %v812 = vld [vmem:[%s3 + $0xf8] sm:$0xff]
    %v813 = vld [vmem:[%s3 + $0x100] sm:$0xff]
    %v814 = vld [vmem:[%s3 + $0x108] sm:$0xff]
    %v815 = vld [vmem:[%s3 + $0x110] sm:$0xff]
    %v816 = vld [vmem:[%s3 + $0x118] sm:$0xff]
    %v817 = vld [vmem:[%s3 + $0x120] sm:$0xff]
    %v818 = vld [vmem:[%s3 + $0x128] sm:$0xff]
    %v819 = vld [vmem:[%s3 + $0x130] sm:$0xff]
    %v820 = vld [vmem:[%s3 + $0x138] sm:$0xff]
    %v821 = vld [vmem:[%s3 + $0x140] sm:$0xff]
    %v822 = vld [vmem:[%s3 + $0x148] sm:$0xff]
    %v823 = vld [vmem:[%s3 + $0x150] sm:$0xff]
    %v824 = vld [vmem:[%s3 + $0x158] sm:$0xff]
    %v825 = vld [vmem:[%s3 + $0x160] sm:$0xff]
    %v826 = vld [vmem:[%s3 + $0x168] sm:$0xff]
    %v827 = vld [vmem:[%s3 + $0x170] sm:$0xff]
    %v828 = vld [vmem:[%s3 + $0x178] sm:$0xff]
    %v829 = vld [vmem:[%s3 + $0x180] sm:$0xff]
    %v830 = vld [vmem:[%s3 + $0x188] sm:$0xff]
    %v831 = vld [vmem:[%s3 + $0x190] sm:$0xff]
    %v832 = vld [vmem:[%s3 + $0x198] sm:$0xff]
    %v833 = vld [vmem:[%s3 + $0x1a0] sm:$0xff]
    %v834 = vld [vmem:[%s3 + $0x1a8] sm:$0xff]
    %v835 = vld [vmem:[%s3 + $0x1b0] sm:$0xff]
    %v836 = vld [vmem:[%s3 + $0x1b8] sm:$0xff]
    %v837 = vld [vmem:[%s3 + $0x1c0] sm:$0xff]
    %v838 = vld [vmem:[%s3 + $0x1c8] sm:$0xff]
    %v839 = vld [vmem:[%s3 + $0x1d0] sm:$0xff]
    %v840 = vld [vmem:[%s3 + $0x1d8] sm:$0xff]
    %v841 = vld [vmem:[%s3 + $0x1e0] sm:$0xff]
    %v842 = vld [vmem:[%s3 + $0x1e8] sm:$0xff]
    %v843 = vld [vmem:[%s3 + $0x1f0] sm:$0xff]
    %v844 = vld [vmem:[%s3 + $0x1f8] sm:$0xff]
    %v845 = vld [vmem:[%s3 + $0x200] sm:$0xff]
    %v846 = vld [vmem:[%s3 + $0x208] sm:$0xff]
    %v847 = vld [vmem:[%s3 + $0x210] sm:$0xff]
    %v848 = vld [vmem:[%s3 + $0x218] sm:$0xff]
    %v849 = vld [vmem:[%s3 + $0x220] sm:$0xff]
    %v850 = vld [vmem:[%s3 + $0x228] sm:$0xff]
    %v851 = vld [vmem:[%s3 + $0x230] sm:$0xff]
    %v852 = vld [vmem:[%s3 + $0x238] sm:$0xff]
    %v853 = vld [vmem:[%s3 + $0x240] sm:$0xff]
    %v854 = vld [vmem:[%s3 + $0x248] sm:$0xff]
    %v855 = vld [vmem:[%s3 + $0x250] sm:$0xff]
    %v856 = vld [vmem:[%s3 + $0x258] sm:$0xff]
    %v857 = vld [vmem:[%s3 + $0x260] sm:$0xff]
    %v858 = vld [vmem:[%s3 + $0x268] sm:$0xff]
    %v859 = vld [vmem:[%s3 + $0x270] sm:$0xff]
    %v860 = vld [vmem:[%s3 + $0x278] sm:$0xff]
    %v861 = vld [vmem:[%s3 + $0x280] sm:$0xff]
    %v862 = vld [vmem:[%s3 + $0x288] sm:$0xff]
    %v863 = vld [vmem:[%s3 + $0x290] sm:$0xff]
    %v864 = vld [vmem:[%s3 + $0x298] sm:$0xff]
    %v865 = vld [vmem:[%s3 + $0x2a0] sm:$0xff]
    %v866 = vld [vmem:[%s3 + $0x2a8] sm:$0xff]
    %v867 = vld [vmem:[%s3 + $0x2b0] sm:$0xff]
    %v868 = vld [vmem:[%s3 + $0x2b8] sm:$0xff]
    %v869 = vld [vmem:[%s3 + $0x2c0] sm:$0xff]
    %v870 = vld [vmem:[%s3 + $0x2c8] sm:$0xff]
    %v871 = vld [vmem:[%s3 + $0x2d0] sm:$0xff]
    %v872 = vld [vmem:[%s3 + $0x2d8] sm:$0xff]
    %v873 = vld [vmem:[%s3 + $0x2e0] sm:$0xff]
    %v874 = vld [vmem:[%s3 + $0x2e8] sm:$0xff]
    %v875 = vld [vmem:[%s3 + $0x2f0] sm:$0xff]
    %v876 = vld [vmem:[%s3 + $0x2f8] sm:$0xff]
    %s877 = scalar_lea.vmem %s1, 76
    %v878 = vld [vmem:[%s877] ss:$8 sm:$0x3]
    %v880 = vlaneseq
    %v881 = vshrl.u32 %v880, 7
    %v882 = vsub.s32 0, %v881
    %v883 = vrot.slane %v878, %v882
    %v884 = vlaneseq
    %v885 = vshrl.u32 %v884, 7
    %v886 = vsub.s32 1, %v885
    %v887 = vrot.slane %v878, %v886
    %890 = vmatprep.subr.mxu0 %v782
    %891 = vmatpush1.msra.mxu0 %v781
    %892 = vmatprep.subr.mxu0 %v784
    %893 = vmatpush1.msra.mxu0 %v783
    %894 = vmatprep.subr.mxu0 %v786
    %895 = vmatpush1.msra.mxu0 %v785
    %896 = vmatprep.subr.mxu0 %v788
    %897 = vmatpush1.msra.mxu0 %v787
    %898 = vmatprep.subr.mxu0 %v790
    %899 = vmatpush1.msra.mxu0 %v789
    %900 = vmatprep.subr.mxu0 %v792
    %901 = vmatpush1.msra.mxu0 %v791
    %902 = vmatprep.subr.mxu0 %v794
    %903 = vmatpush1.msra.mxu0 %v793
    %904 = vmatprep.subr.mxu0 %v796
    %905 = vmatpush1.msra.mxu0 %v795
    %906 = vmatprep.subr.mxu0 %v798
    %907 = vmatpush1.msra.mxu0 %v797
    %908 = vmatprep.subr.mxu0 %v800
    %909 = vmatpush1.msra.mxu0 %v799
    %910 = vmatprep.subr.mxu0 %v802
    %911 = vmatpush1.msra.mxu0 %v801
    %912 = vmatprep.subr.mxu0 %v804
    %913 = vmatpush1.msra.mxu0 %v803
    %914 = vmatprep.subr.mxu0 %v806
    %915 = vmatpush1.msra.mxu0 %v805
    %916 = vmatprep.subr.mxu0 %v808
    %917 = vmatpush1.msra.mxu0 %v807
    %918 = vmatprep.subr.mxu0 %v810
    %919 = vmatpush1.msra.mxu0 %v809
    %920 = vmatprep.subr.mxu0 %v812
    %921 = vmatpush1.msra.mxu0 %v811
    %922 = vmatprep.subr.mxu0 %v814
    %923 = vmatpush1.msra.mxu0 %v813
    %924 = vmatprep.subr.mxu0 %v816
    %925 = vmatpush1.msra.mxu0 %v815
    %926 = vmatprep.subr.mxu0 %v818
    %927 = vmatpush1.msra.mxu0 %v817
    %928 = vmatprep.subr.mxu0 %v820
    %929 = vmatpush1.msra.mxu0 %v819
    %930 = vmatprep.subr.mxu0 %v822
    %931 = vmatpush1.msra.mxu0 %v821
    %932 = vmatprep.subr.mxu0 %v824
    %933 = vmatpush1.msra.mxu0 %v823
    %934 = vmatprep.subr.mxu0 %v826
    %935 = vmatpush1.msra.mxu0 %v825
    %936 = vmatprep.subr.mxu0 %v828
    %937 = vmatpush1.msra.mxu0 %v827
    %938 = vmatprep.subr.mxu0 %v830
    %939 = vmatpush1.msra.mxu0 %v829
    %940 = vmatprep.subr.mxu0 %v832
    %941 = vmatpush1.msra.mxu0 %v831
    %942 = vmatprep.subr.mxu0 %v834
    %943 = vmatpush1.msra.mxu0 %v833
    %944 = vmatprep.subr.mxu0 %v836
    %945 = vmatpush1.msra.mxu0 %v835
    %946 = vmatprep.subr.mxu0 %v838
    %947 = vmatpush1.msra.mxu0 %v837
    %948 = vmatprep.subr.mxu0 %v840
    %949 = vmatpush1.msra.mxu0 %v839
    %950 = vmatprep.subr.mxu0 %v842
    %951 = vmatpush1.msra.mxu0 %v841
    %952 = vmatprep.subr.mxu0 %v844
    %953 = vmatpush1.msra.mxu0 %v843
    %954 = vmatprep.mubr.f32.mxu0 %v779
    %955 = vmatmul.mubr.f32.gmra.mrb[0].mxu0 %v778
    %v956 = vpop.f32.mrb[0].mxu0
    %v957 = vadd.f32 %v883, %v956
    %v958 = vpop.f32.mrb[0].mxu0
    %v959 = vadd.f32 %v887, %v958
    %960 = vdwg.mxu0
    %961 = vmatprep.subr.mxu0 %v846
    %962 = vmatpush1.msra.mxu0 %v845
    %963 = vmatprep.subr.mxu0 %v848
    %964 = vmatpush1.msra.mxu0 %v847
    %965 = vmatprep.subr.mxu0 %v850
    %966 = vmatpush1.msra.mxu0 %v849
    %967 = vmatprep.subr.mxu0 %v852
    %968 = vmatpush1.msra.mxu0 %v851
    %969 = vmatprep.subr.mxu0 %v854
    %970 = vmatpush1.msra.mxu0 %v853
    %971 = vmatprep.subr.mxu0 %v856
    %972 = vmatpush1.msra.mxu0 %v855
    %973 = vmatprep.subr.mxu0 %v858
    %974 = vmatpush1.msra.mxu0 %v857
    %975 = vmatprep.subr.mxu0 %v860
    %976 = vmatpush1.msra.mxu0 %v859
    %977 = vmatprep.subr.mxu0 %v862
    %978 = vmatpush1.msra.mxu0 %v861
    %979 = vmatprep.subr.mxu0 %v864
    %980 = vmatpush1.msra.mxu0 %v863
    %981 = vmatprep.subr.mxu0 %v866
    %982 = vmatpush1.msra.mxu0 %v865
    %983 = vmatprep.subr.mxu0 %v868
    %984 = vmatpush1.msra.mxu0 %v867
    %985 = vmatprep.subr.mxu0 %v870
    %986 = vmatpush1.msra.mxu0 %v869
    %987 = vmatprep.subr.mxu0 %v872
    %988 = vmatpush1.msra.mxu0 %v871
    %989 = vmatprep.subr.mxu0 %v874
    %990 = vmatpush1.msra.mxu0 %v873
    %991 = vmatprep.subr.mxu0 %v876
    %992 = vmatpush1.msra.mxu0 %v875
    %993 = vmatprep.subr.mxu0 0.0
    %994 = vmatpush1.msra.mxu0 0.0
    %995 = vmatprep.subr.mxu0 0.0
    %996 = vmatpush1.msra.mxu0 0.0
    %997 = vmatprep.subr.mxu0 0.0
    %998 = vmatpush1.msra.mxu0 0.0
    %999 = vmatprep.subr.mxu0 0.0
    %1000 = vmatpush1.msra.mxu0 0.0
    %1001 = vmatprep.subr.mxu0 0.0
    %1002 = vmatpush1.msra.mxu0 0.0
    %1003 = vmatprep.subr.mxu0 0.0
    %1004 = vmatpush1.msra.mxu0 0.0
    %1005 = vmatprep.subr.mxu0 0.0
    %1006 = vmatpush1.msra.mxu0 0.0
    %1007 = vmatprep.subr.mxu0 0.0
    %1008 = vmatpush1.msra.mxu0 0.0
    %1009 = vmatprep.subr.mxu0 0.0
    %1010 = vmatpush1.msra.mxu0 0.0
    %1011 = vmatprep.subr.mxu0 0.0
    %1012 = vmatpush1.msra.mxu0 0.0
    %1013 = vmatprep.subr.mxu0 0.0
    %1014 = vmatpush1.msra.mxu0 0.0
    %1015 = vmatprep.subr.mxu0 0.0
    %1016 = vmatpush1.msra.mxu0 0.0
    %1017 = vmatprep.subr.mxu0 0.0
    %1018 = vmatpush1.msra.mxu0 0.0
    %1019 = vmatprep.subr.mxu0 0.0
    %1020 = vmatpush1.msra.mxu0 0.0
    %1021 = vmatprep.subr.mxu0 0.0
    %1022 = vmatpush1.msra.mxu0 0.0
    %1023 = vmatprep.subr.mxu0 0.0
    %1024 = vmatpush1.msra.mxu0 0.0
    %1025 = vmatprep.mubr.f32.mxu0 0.0
    %1026 = vmatmul.mubr.f32.gmra.mrb[0].mxu0 %v780
    %v1027 = vpop.f32.mrb[0].mxu0
    %v1028 = vadd.f32 %v957, %v1027
    %v1029 = vpop.f32.mrb[0].mxu0
    %v1030 = vadd.f32 %v959, %v1029
    %1031 = vdwg.mxu0
    %v1032 = vmax.f32 %v1028, 0.0
    %v1033 = vmax.f32 %v1030, 0.0
    %s1034 = scalar_lea.vmem %s1, 77
    %v1035 = vld [vmem:[%s1034] ss:$8 sm:$0x3]
    %s1036 = scalar_lea.vmem %s1, 78
    %v1037 = vld [vmem:[%s1036] ss:$8 sm:$0x3]
    %vm1038 = vcmask 523264
    %v1039 = vsel %vm1038, %v1032, 0.0
    %1040 = vadd.xlane.f32.xlu0 %v1039
    %v1041 = vpop.xlane.xlu0 %1040
    %v1042 = vrcp.pop 64.0
    %v1043 = vmul.f32 %v1041, %v1042
    %v1044 = vsub.f32 %v1032, %v1043
    %v1045 = vmul.f32 %v1044, %v1044
    %v1046 = vsel %vm1038, %v1045, 0.0
    %1047 = vadd.xlane.f32.xlu0 %v1046
    %v1048 = vpop.xlane.xlu0 %1047
    %v1049 = vmul.f32 %v1048, %v1042
    %v1050 = vadd.f32 %v1049, 1e-05
    %v1051 = vrsqrt.pop %v1050
    %v1052 = vmul.f32 %v1044, %v1051
    %1054 = vrot.lane.b32.xlu0 %v1032, 64
    %v1055 = vpop.permute.xlu0 %1054
    %v1057 = vsel %vm1038, %v1055, 0.0
    %1058 = vadd.xlane.f32.xlu0 %v1057
    %v1059 = vpop.xlane.xlu0 %1058
    %v1060 = vmul.f32 %v1059, %v1042
    %v1061 = vsub.f32 %v1032, %v1060
    %v1062 = vmul.f32 %v1061, %v1061
    %1064 = vrot.lane.b32.xlu0 %v1062, 64
    %v1065 = vpop.permute.xlu0 %1064
    %v1067 = vsel %vm1038, %v1065, 0.0
    %1068 = vadd.xlane.f32.xlu0 %v1067
    %v1069 = vpop.xlane.xlu0 %1068
    %v1070 = vmul.f32 %v1069, %v1042
    %v1071 = vadd.f32 %v1070, 1e-05
    %v1072 = vrsqrt.pop %v1071
    %v1073 = vmul.f32 %v1061, %v1072
    %v1074 = vsel %vm1038, %v1033, 0.0
    %1075 = vadd.xlane.f32.xlu0 %v1074
    %v1076 = vpop.xlane.xlu0 %1075
    %v1077 = vmul.f32 %v1076, %v1042
    %v1078 = vsub.f32 %v1033, %v1077
    %v1079 = vmul.f32 %v1078, %v1078
    %v1080 = vsel %vm1038, %v1079, 0.0
    %1081 = vadd.xlane.f32.xlu0 %v1080
    %v1082 = vpop.xlane.xlu0 %1081
    %v1083 = vmul.f32 %v1082, %v1042
    %v1084 = vadd.f32 %v1083, 1e-05
    %v1085 = vrsqrt.pop %v1084
    %v1086 = vmul.f32 %v1078, %v1085
    %v1087 = vsel %vm1038, %v1052, %v1073
    %v1089 = vlaneseq
    %v1090 = vshrl.u32 %v1089, 7
    %v1091 = vsub.s32 0, %v1090
    %v1092 = vrot.slane %v1035, %v1091
    %v1093 = vlaneseq
    %v1094 = vshrl.u32 %v1093, 7
    %v1095 = vsub.s32 1, %v1094
    %v1096 = vrot.slane %v1035, %v1095
    %v1099 = vmul.f32 %v1087, %v1092
    %v1100 = vmul.f32 %v1086, %v1096
    %v1102 = vlaneseq
    %v1103 = vshrl.u32 %v1102, 7
    %v1104 = vsub.s32 0, %v1103
    %v1105 = vrot.slane %v1037, %v1104
    %v1106 = vlaneseq
    %v1107 = vshrl.u32 %v1106, 7
    %v1108 = vsub.s32 1, %v1107
    %v1109 = vrot.slane %v1037, %v1108
    %v1112 = vadd.f32 %v1099, %v1105
    %v1113 = vadd.f32 %v1100, %v1109
    %v1114 = vld [vmem:[%s4] sm:$0xff]
    %v1115 = vld [vmem:[%s4 + $0x8] sm:$0xff]
    %v1116 = vld [vmem:[%s4 + $0x10] sm:$0xff]
    %v1117 = vld [vmem:[%s4 + $0x18] sm:$0xff]
    %v1118 = vld [vmem:[%s4 + $0x20] sm:$0xff]
    %v1119 = vld [vmem:[%s4 + $0x28] sm:$0xff]
    %v1120 = vld [vmem:[%s4 + $0x30] sm:$0xff]
    %v1121 = vld [vmem:[%s4 + $0x38] sm:$0xff]
    %v1122 = vld [vmem:[%s4 + $0x40] sm:$0xff]
    %v1123 = vld [vmem:[%s4 + $0x48] sm:$0xff]
    %v1124 = vld [vmem:[%s4 + $0x50] sm:$0xff]
    %v1125 = vld [vmem:[%s4 + $0x58] sm:$0xff]
    %v1126 = vld [vmem:[%s4 + $0x60] sm:$0xff]
    %v1127 = vld [vmem:[%s4 + $0x68] sm:$0xff]
    %v1128 = vld [vmem:[%s4 + $0x70] sm:$0xff]
    %v1129 = vld [vmem:[%s4 + $0x78] sm:$0xff]
    %v1130 = vld [vmem:[%s4 + $0x80] sm:$0xff]
    %v1131 = vld [vmem:[%s4 + $0x88] sm:$0xff]
    %v1132 = vld [vmem:[%s4 + $0x90] sm:$0xff]
    %v1133 = vld [vmem:[%s4 + $0x98] sm:$0xff]
    %v1134 = vld [vmem:[%s4 + $0xa0] sm:$0xff]
    %v1135 = vld [vmem:[%s4 + $0xa8] sm:$0xff]
    %v1136 = vld [vmem:[%s4 + $0xb0] sm:$0xff]
    %v1137 = vld [vmem:[%s4 + $0xb8] sm:$0xff]
    %v1138 = vld [vmem:[%s1 + $0x4f] ss:$0 sm:$0xff]
    %v1140 = vsel %vm1038, %v1113, 0
    %1142 = vmatprep.subr.mxu0 0.0
    %1143 = vmatpush1.msra.mxu0 %v1114
    %1144 = vmatprep.subr.mxu0 0.0
    %1145 = vmatpush1.msra.mxu0 %v1115
    %1146 = vmatprep.subr.mxu0 0.0
    %1147 = vmatpush1.msra.mxu0 %v1116
    %1148 = vmatprep.subr.mxu0 0.0
    %1149 = vmatpush1.msra.mxu0 %v1117
    %1150 = vmatprep.subr.mxu0 0.0
    %1151 = vmatpush1.msra.mxu0 %v1118
    %1152 = vmatprep.subr.mxu0 0.0
    %1153 = vmatpush1.msra.mxu0 %v1119
    %1154 = vmatprep.subr.mxu0 0.0
    %1155 = vmatpush1.msra.mxu0 %v1120
    %1156 = vmatprep.subr.mxu0 0.0
    %1157 = vmatpush1.msra.mxu0 %v1121
    %1158 = vmatprep.subr.mxu0 0.0
    %1159 = vmatpush1.msra.mxu0 %v1122
    %1160 = vmatprep.subr.mxu0 0.0
    %1161 = vmatpush1.msra.mxu0 %v1123
    %1162 = vmatprep.subr.mxu0 0.0
    %1163 = vmatpush1.msra.mxu0 %v1124
    %1164 = vmatprep.subr.mxu0 0.0
    %1165 = vmatpush1.msra.mxu0 %v1125
    %1166 = vmatprep.subr.mxu0 0.0
    %1167 = vmatpush1.msra.mxu0 %v1126
    %1168 = vmatprep.subr.mxu0 0.0
    %1169 = vmatpush1.msra.mxu0 %v1127
    %1170 = vmatprep.subr.mxu0 0.0
    %1171 = vmatpush1.msra.mxu0 %v1128
    %1172 = vmatprep.subr.mxu0 0.0
    %1173 = vmatpush1.msra.mxu0 %v1129
    %1174 = vmatprep.subr.mxu0 0.0
    %1175 = vmatpush1.msra.mxu0 %v1130
    %1176 = vmatprep.subr.mxu0 0.0
    %1177 = vmatpush1.msra.mxu0 %v1131
    %1178 = vmatprep.subr.mxu0 0.0
    %1179 = vmatpush1.msra.mxu0 %v1132
    %1180 = vmatprep.subr.mxu0 0.0
    %1181 = vmatpush1.msra.mxu0 %v1133
    %1182 = vmatprep.subr.mxu0 0.0
    %1183 = vmatpush1.msra.mxu0 %v1134
    %1184 = vmatprep.subr.mxu0 0.0
    %1185 = vmatpush1.msra.mxu0 %v1135
    %1186 = vmatprep.subr.mxu0 0.0
    %1187 = vmatpush1.msra.mxu0 %v1136
    %1188 = vmatprep.subr.mxu0 0.0
    %1189 = vmatpush1.msra.mxu0 %v1137
    %1190 = vmatprep.subr.mxu0 0.0
    %1191 = vmatpush1.msra.mxu0 0.0
    %1192 = vmatprep.subr.mxu0 0.0
    %1193 = vmatpush1.msra.mxu0 0.0
    %1194 = vmatprep.subr.mxu0 0.0
    %1195 = vmatpush1.msra.mxu0 0.0
    %1196 = vmatprep.subr.mxu0 0.0
    %1197 = vmatpush1.msra.mxu0 0.0
    %1198 = vmatprep.subr.mxu0 0.0
    %1199 = vmatpush1.msra.mxu0 0.0
    %1200 = vmatprep.subr.mxu0 0.0
    %1201 = vmatpush1.msra.mxu0 0.0
    %1202 = vmatprep.subr.mxu0 0.0
    %1203 = vmatpush1.msra.mxu0 0.0
    %1204 = vmatprep.subr.mxu0 0.0
    %1205 = vmatpush1.msra.mxu0 0.0
    %1206 = vmatprep.mubr.f32.mxu0 %v1140
    %1207 = vmatmul.mubr.f32.gmra.mrb[0].mxu0 %v1112
    %v1208 = vpop.f32.mrb[0].mxu0
    %v1209 = vadd.f32 %v1138, %v1208
    %v1210 = vpop.f32.mrb[0].mxu0
    %1211 = vdwg.mxu0
    %v1212 = vlaneseq
    %v1213 = vand.u32 %v1212, 127
    %v1214 = vmax.f32 %v1209, 0.0
    %v1215 = vand.u32 2147483647, %v1209
    %v1216 = vsub.f32 0.0, %v1215
    %v1217 = vmul.f32 %v1216, 1.442695
    %v1218 = vpow.pop %v1217
    %v1219 = vadd.f32 %v1218, 1.0
    %v1220 = vlog2.pop %v1219
    %v1221 = vmul.f32 %v1220, 0.6931472
    %v1222 = vmul.f32 -0.5, %v1218
    %v1223 = vadd.f32 %v1222, 1.0
    %v1224 = vmul.f32 %v1223, %v1218
    %v1225 = vand.u32 2147483647, %v1218
    %vm1226 = vcmp.lt.f32.partialorder %v1225, 0.0004427343
    %v1227 = vsel %vm1226, %v1224, %v1221
    %v1228 = vadd.f32 %v1214, %v1227
    %v1229 = vadd.f32 %v1228, 1e-05
    %vm1230 = vcmp.ge.s32.totalorder %v1213, 4
    %vm1231 = vcmp.lt.s32.totalorder %v1213, 8
    %vm1232 = vmand %vm1230, %vm1231
    %v1233 = vsel %vm1232, %v1229, %v1209
    %1234 = vst [vmem:[%s5] sm:$0xff] %v1233
    // Predicated region
    $region26: #{model_forward.1} parent=1 // pred_check
      _
    $region27: #{model_forward.1} parent=1 // pred_check_branch
      %1236 = sbr.rel (0) target = $region29
    $region28: #{model_forward.1} parent=1 // pred_region
      _
    $region29: #{model_forward.1} parent=1 // pred_fallthru
      _
    // Predicated region
    $region30: #{model_forward.1} parent=1 // pred_check
      _
    $region31: #{model_forward.1} parent=1 // pred_check_branch
      %1238 = sbr.rel (0) target = $region33
    $region32: #{model_forward.1} parent=1 // pred_region
      _
    $region33: #{model_forward.1} parent=1 // pred_fallthru
      _
    %1239 = vsyncpa [#allocation3], 1

</llo_original>
